<compile_context>
chip_gen: v5e
topology: v5e:2x2
jax: 0.10.0
libtpu: 0.0.40
codegen_flags: <defaults>
</compile_context>

<pallas_src>
import jax
import jax.numpy as jnp
from jax import lax
from jax.experimental import pallas as pl
from jax.experimental.pallas import tpu as pltpu

HIDDEN = 32        # hidden_size
NUM_LAYERS = 2     # num_layers (kernel specialized to 2)
OUT_CH = 12        # decoder_proj out_features
STATE_DIM = 3      # input_proj in_features


def _ppg_decode_kernel(b_in_ref, w_ih_ref, w_hh_ref, b_ih_ref, b_hh_ref,
                       w_out_t_ref, b_out_t_ref,
                       out_ref,
                       seq_ref):
    B, _, L = out_ref.shape
    H = seq_ref.shape[1]
    G = 4 * H

    # ---------------- hoisted constants (built once per kernel call) ---------
    lane = lax.broadcasted_iota(jnp.int32, (1, G), 1)
    g_row = (lane >= 2 * H) & (lane < 3 * H)            # g-gate (tanh) lanes
    g_mask = jnp.broadcast_to(g_row, (B, G))

    # sigmoid(x) = 0.5*tanh(x/2) + 0.5: pre-scale i/f/o pre-activations by 0.5
    # so the cell needs a single tanh over the whole fused gates vreg.
    scale = jnp.where(g_row, 1.0, 0.5).astype(jnp.float32)        # (1, 4H)

    w_hh0 = w_hh_ref[0] * scale                         # (H, 4H)
    w_ih1 = w_ih_ref[1] * scale                         # (H, 4H)
    w_hh1 = w_hh_ref[1] * scale                         # (H, 4H)
    # Both consumers of h0 fused into one RHS -> 2 dots per step, not 3.
    w_h0 = jnp.concatenate([w_hh0, w_ih1], axis=1)      # (H, 8H)

    # Zero ODE states => input_proj(states) == b_in for every (t, b): layer 0's
    # whole input-to-hidden contribution is one constant row.
    # NOTE: valid only because decode() is always fed zero states in forward().
    g0_row = (jnp.dot(b_in_ref[...], w_ih_ref[0],
                      preferred_element_type=jnp.float32)
              + b_ih_ref[0] + b_hh_ref[0]) * scale      # (1, 4H)
    g0_const = jnp.broadcast_to(g0_row, (B, G))         # hoisted broadcast
    g1_bias = jnp.broadcast_to((b_ih_ref[1] + b_hh_ref[1]) * scale, (B, G))

    def cell(gates_scaled, c):
        t = jnp.tanh(gates_scaled)                      # one EUP pass over 4H
        act = jnp.where(g_mask, t, 0.5 * t + 0.5)       # i/f/o == sigmoid(orig)
        i_g = act[:, 0:H]
        f_g = act[:, H:2 * H]
        g_g = act[:, 2 * H:3 * H]
        o_g = act[:, 3 * H:4 * H]
        c_new = f_g * c + i_g * g_g
        h_new = o_g * jnp.tanh(c_new)
        return h_new, c_new

    zeros_bh = jnp.zeros((B, H), jnp.float32)

    # ---------------- wavefront recurrence ------------------------------------
    # prologue: layer-0 step 0 (h0 == 0 -> no matmul needed at all)
    h0, c0 = cell(g0_const, zeros_bh)

    def wavestep(k, carry):
        h0, c0, h1, c1 = carry                          # h0 = layer-0 out @ k-1
        g01 = jnp.dot(h0, w_h0, preferred_element_type=jnp.float32)   # (B, 8H)
        # layer-0 step k
        h0n, c0n = cell(g01[:, :G] + g0_const, c0)
        # layer-1 step k-1 (input = h0), independent of layer-0's step above
        gat1 = (g01[:, G:] + g1_bias
                + jnp.dot(h1, w_hh1, preferred_element_type=jnp.float32))
        h1n, c1n = cell(gat1, c1)
        idx = pl.multiple_of((k - 1) * B, B)
        seq_ref[pl.ds(idx, B), :] = h1n                 # time-major packed store
        return (h0n, c0n, h1n, c1n)

    unroll = max(1, min(8, L - 1))
    h0, c0, h1, c1 = lax.fori_loop(1, L, wavestep, (h0, c0, zeros_bh, zeros_bh),
                                   unroll=unroll)

    # epilogue: layer-1 step L-1
    g01 = jnp.dot(h0, w_h0, preferred_element_type=jnp.float32)
    gat1 = (g01[:, G:] + g1_bias
            + jnp.dot(h1, w_hh1, preferred_element_type=jnp.float32))
    h1, _ = cell(gat1, c1)
    seq_ref[pl.ds((L - 1) * B, B), :] = h1

    # ------- decoder_proj (Conv1d k=1 == Linear(H, 12)), lane-dense output ----
    # One (12,H)@(H,L) GEMM per batch; output (B, 12, L) has L on lanes.
    for b in range(B):                                  # static, B is tiny
        seq_b = seq_ref[pl.ds(b, L, stride=B), :]       # (L, H), time ordered
        out_ref[b] = (jnp.dot(w_out_t_ref[...], seq_b.T,
                              preferred_element_type=jnp.float32)
                      + b_out_t_ref[...])               # (12, L)


def ppg_to_ecg_forward(ecg_no_interp, baseline_df, length_sim, length_window, params):
    """Returns (out (B, 12, length_sim), jac=0.0), matching PPGtoECG.forward."""
    del baseline_df, length_window            # unused by the PyTorch forward
    B = ecg_no_interp.shape[0]
    L = int(length_sim)

    # TODO(synk): wavefront kernel is specialized to the 2-layer decoder LSTM.
    assert params["w_ih"].shape[0] == 2

    w_out_t = jnp.transpose(params["w_out"])  # (12, H)
    b_out_t = jnp.transpose(params["b_out"])  # (12, 1)

    # VMEM budget (lane-padded): seq (L*B, 128 lanes) + out (B, 16, roundup(L,128)).
    seq_bytes = L * B * 128 * 4
    out_bytes = B * 16 * (-(-L // 128) * 128) * 4
    vmem_limit = int(max(32 << 20,
                         min(2 * (seq_bytes + out_bytes) + (2 << 20), 64 << 20)))

    vmem = pl.BlockSpec(memory_space=pltpu.MemorySpace.VMEM)
    out = pl.pallas_call(
        _ppg_decode_kernel,
        out_shape=jax.ShapeDtypeStruct((B, OUT_CH, L), jnp.float32),
        in_specs=[vmem] * 7,
        out_specs=vmem,
        scratch_shapes=[pltpu.VMEM((L * B, HIDDEN), jnp.float32)],  # layer-1 hs
        compiler_params=pltpu.CompilerParams(vmem_limit_bytes=vmem_limit),
    )(params["b_in"],
      params["w_ih"], params["w_hh"], params["b_ih"], params["b_hh"],
      w_out_t, b_out_t)
    jac = 0.0
    return out, jac


def init_params(key, hidden=HIDDEN, num_layers=NUM_LAYERS):
    ks = jax.random.split(key, 8)
    s = 1.0 / jnp.sqrt(hidden)
    u = lambda k, shape: jax.random.uniform(k, shape, jnp.float32, -s, s)
    return {
        "w_in":  u(ks[0], (STATE_DIM, hidden)),               # input_proj.weight.T (ref only)
        "b_in":  u(ks[1], (1, hidden)),                       # input_proj.bias
        "w_ih":  u(ks[2], (num_layers, hidden, 4 * hidden)),  # weight_ih_l{k}.T
        "w_hh":  u(ks[3], (num_layers, hidden, 4 * hidden)),  # weight_hh_l{k}.T
        "b_ih":  u(ks[4], (num_layers, 1, 4 * hidden)),
        "b_hh":  u(ks[5], (num_layers, 1, 4 * hidden)),
        "w_out": u(ks[6], (hidden, OUT_CH)),                  # conv.weight[:, :, 0].T
        "b_out": u(ks[7], (1, OUT_CH)),
    }


def ref_forward(ecg_no_interp, length_sim, params):
    """Pure-JAX reference of the same forward pass (keeps the explicit
    input_proj on zero states and the sigmoid gates, so it also validates the
    b_in shortcut and the single-tanh rewrite)."""
    B = ecg_no_interp.shape[0]
    L = int(length_sim)
    H = HIDDEN
    states = jnp.zeros((B, L, STATE_DIM), jnp.float32)
    x = states.reshape(B * L, STATE_DIM) @ params["w_in"] + params["b_in"]
    seq = jnp.transpose(x.reshape(B, L, H), (1, 0, 2))
    for layer in range(NUM_LAYERS):
        h = jnp.zeros((B, H), jnp.float32)
        c = jnp.zeros((B, H), jnp.float32)
        outs = []
        for t in range(L):
            gates = (seq[t] @ params["w_ih"][layer] + h @ params["w_hh"][layer]
                     + params["b_ih"][layer] + params["b_hh"][layer])
            i_g = jax.nn.sigmoid(gates[:, :H])
            f_g = jax.nn.sigmoid(gates[:, H:2 * H])
            g_g = jnp.tanh(gates[:, 2 * H:3 * H])
            o_g = jax.nn.sigmoid(gates[:, 3 * H:])
            c = f_g * c + i_g * g_g
            h = o_g * jnp.tanh(c)
            outs.append(h)
        seq = jnp.stack(outs, 0)
    dec = seq.reshape(L * B, H) @ params["w_out"] + params["b_out"]
    return jnp.transpose(dec.reshape(L, B, OUT_CH), (1, 2, 0))


if __name__ == "__main__":
    key = jax.random.PRNGKey(0)
    kp, ke, kb = jax.random.split(key, 3)
    params = init_params(kp)

    B, L_in, L_sim, L_win = 2, 16, 8, 4
    ecg_no_interp = jax.random.normal(ke, (B, L_in, 12), jnp.float32)
    baseline_df = jax.random.normal(kb, (B, 49), jnp.float32)

    out, jac = ppg_to_ecg_forward(ecg_no_interp, baseline_df, L_sim, L_win, params)
    out = jax.block_until_ready(out)

    assert out.shape == (B, OUT_CH, L_sim), out.shape
    assert jac == 0.0
    ref = ref_forward(ecg_no_interp, L_sim, params)
    assert jnp.allclose(out, ref, atol=1e-4), float(jnp.max(jnp.abs(out - ref)))
    print("KERNEL_OK")
</pallas_src>

<mosaic_0001>
module attributes {stable_mosaic.version = 11 : i64} {
  func.func @_ppg_decode_kernel(%arg0: memref<1x32xf32, #tpu.memory_space<vmem>>, %arg1: memref<2x32x128xf32, #tpu.memory_space<vmem>>, %arg2: memref<2x32x128xf32, #tpu.memory_space<vmem>>, %arg3: memref<2x1x128xf32, #tpu.memory_space<vmem>>, %arg4: memref<2x1x128xf32, #tpu.memory_space<vmem>>, %arg5: memref<12x32xf32, #tpu.memory_space<vmem>>, %arg6: memref<12x1xf32, #tpu.memory_space<vmem>>, %arg7: memref<2x12x8xf32, #tpu.memory_space<vmem>>, %arg8: memref<16x32xf32, #tpu.memory_space<vmem>>) attributes {dimension_semantics = [], scalar_prefetch = 0 : i64, scratch_operands = 1 : i64, tpu.core_type = #tpu.core_type<tc>} {
    %0 = tpu.iota {dimensions = array<i32: 1>} : vector<1x128xi32>
    %c64_i32 = arith.constant 64 : i32
    %1 = vector.broadcast %c64_i32 : i32 to vector<1x128xi32>
    %2 = arith.cmpi sge, %0, %1 : vector<1x128xi32>
    %c96_i32 = arith.constant 96 : i32
    %3 = vector.broadcast %c96_i32 : i32 to vector<1x128xi32>
    %4 = arith.cmpi slt, %0, %3 : vector<1x128xi32>
    %5 = arith.andi %2, %4 : vector<1x128xi1>
    %6 = vector.shape_cast %5 : vector<1x128xi1> to vector<1x128xi1>
    %7 = vector.broadcast %6 : vector<1x128xi1> to vector<2x128xi1>
    %cst = arith.constant 1.000000e+00 : f32
    %cst_0 = arith.constant 5.000000e-01 : f32
    %8 = vector.broadcast %cst : f32 to vector<1x128xf32>
    %9 = vector.broadcast %cst_0 : f32 to vector<1x128xf32>
    %10 = arith.select %5, %8, %9 : vector<1x128xi1>, vector<1x128xf32>
    %c0 = arith.constant 0 : index
    %c0_1 = arith.constant 0 : index
    %c0_2 = arith.constant 0 : index
    %11 = vector.load %arg2[%c0, %c0_1, %c0_2] : memref<2x32x128xf32, #tpu.memory_space<vmem>>, vector<1x32x128xf32>
    %12 = vector.shape_cast %11 : vector<1x32x128xf32> to vector<32x128xf32>
    %13 = vector.broadcast %10 : vector<1x128xf32> to vector<32x128xf32>
    %14 = arith.mulf %12, %13 : vector<32x128xf32>
    %c1 = arith.constant 1 : index
    %c0_3 = arith.constant 0 : index
    %c0_4 = arith.constant 0 : index
    %15 = vector.load %arg1[%c1, %c0_3, %c0_4] : memref<2x32x128xf32, #tpu.memory_space<vmem>>, vector<1x32x128xf32>
    %16 = vector.shape_cast %15 : vector<1x32x128xf32> to vector<32x128xf32>
    %17 = vector.broadcast %10 : vector<1x128xf32> to vector<32x128xf32>
    %18 = arith.mulf %16, %17 : vector<32x128xf32>
    %c1_5 = arith.constant 1 : index
    %c0_6 = arith.constant 0 : index
    %c0_7 = arith.constant 0 : index
    %19 = vector.load %arg2[%c1_5, %c0_6, %c0_7] : memref<2x32x128xf32, #tpu.memory_space<vmem>>, vector<1x32x128xf32>
    %20 = vector.shape_cast %19 : vector<1x32x128xf32> to vector<32x128xf32>
    %21 = vector.broadcast %10 : vector<1x128xf32> to vector<32x128xf32>
    %22 = arith.mulf %20, %21 : vector<32x128xf32>
    %23 = tpu.concatenate %14, %18 in 1 : vector<32x128xf32>, vector<32x128xf32> -> vector<32x256xf32>
    %c0_8 = arith.constant 0 : index
    %c0_9 = arith.constant 0 : index
    %24 = vector.load %arg0[%c0_8, %c0_9] : memref<1x32xf32, #tpu.memory_space<vmem>>, vector<1x32xf32>
    %c0_10 = arith.constant 0 : index
    %c0_11 = arith.constant 0 : index
    %c0_12 = arith.constant 0 : index
    %25 = vector.load %arg1[%c0_10, %c0_11, %c0_12] : memref<2x32x128xf32, #tpu.memory_space<vmem>>, vector<1x32x128xf32>
    %26 = vector.shape_cast %25 : vector<1x32x128xf32> to vector<32x128xf32>
    %cst_13 = arith.constant dense<0.000000e+00> : vector<1x128xf32>
    %27 = tpu.matmul %24, %26, %cst_13 {dimension_numbers = #tpu.dot_dimension_numbers<[1], [0], [0], [1], [0, 0, 1, 1], [], []>} : vector<1x32xf32>, vector<32x128xf32>, vector<1x128xf32> -> vector<1x128xf32>
    %c0_14 = arith.constant 0 : index
    %c0_15 = arith.constant 0 : index
    %c0_16 = arith.constant 0 : index
    %28 = vector.load %arg3[%c0_14, %c0_15, %c0_16] : memref<2x1x128xf32, #tpu.memory_space<vmem>>, vector<1x1x128xf32>
    %29 = vector.shape_cast %28 : vector<1x1x128xf32> to vector<1x128xf32>
    %30 = arith.addf %27, %29 : vector<1x128xf32>
    %c0_17 = arith.constant 0 : index
    %c0_18 = arith.constant 0 : index
    %c0_19 = arith.constant 0 : index
    %31 = vector.load %arg4[%c0_17, %c0_18, %c0_19] : memref<2x1x128xf32, #tpu.memory_space<vmem>>, vector<1x1x128xf32>
    %32 = vector.shape_cast %31 : vector<1x1x128xf32> to vector<1x128xf32>
    %33 = arith.addf %30, %32 : vector<1x128xf32>
    %34 = arith.mulf %33, %10 : vector<1x128xf32>
    %35 = vector.shape_cast %34 : vector<1x128xf32> to vector<1x128xf32>
    %36 = vector.broadcast %35 : vector<1x128xf32> to vector<2x128xf32>
    %c1_20 = arith.constant 1 : index
    %c0_21 = arith.constant 0 : index
    %c0_22 = arith.constant 0 : index
    %37 = vector.load %arg3[%c1_20, %c0_21, %c0_22] : memref<2x1x128xf32, #tpu.memory_space<vmem>>, vector<1x1x128xf32>
    %38 = vector.shape_cast %37 : vector<1x1x128xf32> to vector<1x128xf32>
    %c1_23 = arith.constant 1 : index
    %c0_24 = arith.constant 0 : index
    %c0_25 = arith.constant 0 : index
    %39 = vector.load %arg4[%c1_23, %c0_24, %c0_25] : memref<2x1x128xf32, #tpu.memory_space<vmem>>, vector<1x1x128xf32>
    %40 = vector.shape_cast %39 : vector<1x1x128xf32> to vector<1x128xf32>
    %41 = arith.addf %38, %40 : vector<1x128xf32>
    %42 = arith.mulf %41, %10 : vector<1x128xf32>
    %43 = vector.shape_cast %42 : vector<1x128xf32> to vector<1x128xf32>
    %44 = vector.broadcast %43 : vector<1x128xf32> to vector<2x128xf32>
    %cst_26 = arith.constant 0.000000e+00 : f32
    %45 = vector.broadcast %cst_26 : f32 to vector<2x32xf32>
    %46 = math.tanh %36 : vector<2x128xf32>
    %cst_27 = arith.constant 5.000000e-01 : f32
    %47 = vector.broadcast %cst_27 : f32 to vector<2x128xf32>
    %48 = arith.mulf %47, %46 : vector<2x128xf32>
    %cst_28 = arith.constant 5.000000e-01 : f32
    %49 = vector.broadcast %cst_28 : f32 to vector<2x128xf32>
    %50 = arith.addf %48, %49 : vector<2x128xf32>
    %51 = arith.select %7, %46, %50 : vector<2x128xi1>, vector<2x128xf32>
    %52 = vector.extract_strided_slice %51 {offsets = [0, 0], sizes = [2, 32], strides = [1, 1]} : vector<2x128xf32> to vector<2x32xf32>
    %53 = vector.extract_strided_slice %51 {offsets = [0, 32], sizes = [2, 32], strides = [1, 1]} : vector<2x128xf32> to vector<2x32xf32>
    %54 = vector.extract_strided_slice %51 {offsets = [0, 64], sizes = [2, 32], strides = [1, 1]} : vector<2x128xf32> to vector<2x32xf32>
    %55 = vector.extract_strided_slice %51 {offsets = [0, 96], sizes = [2, 32], strides = [1, 1]} : vector<2x128xf32> to vector<2x32xf32>
    %56 = arith.mulf %53, %45 : vector<2x32xf32>
    %57 = arith.mulf %52, %54 : vector<2x32xf32>
    %58 = arith.addf %56, %57 : vector<2x32xf32>
    %59 = math.tanh %58 : vector<2x32xf32>
    %60 = arith.mulf %55, %59 : vector<2x32xf32>
    %c1_i32 = arith.constant 1 : i32
    %cst_29 = arith.constant dense<0.000000e+00> : vector<2x256xf32>
    %61 = tpu.matmul %60, %23, %cst_29 {dimension_numbers = #tpu.dot_dimension_numbers<[1], [0], [0], [1], [0, 0, 1, 1], [], []>} : vector<2x32xf32>, vector<32x256xf32>, vector<2x256xf32> -> vector<2x256xf32>
    %62 = vector.extract_strided_slice %61 {offsets = [0, 0], sizes = [2, 128], strides = [1, 1]} : vector<2x256xf32> to vector<2x128xf32>
    %63 = arith.addf %62, %36 : vector<2x128xf32>
    %64 = math.tanh %63 : vector<2x128xf32>
    %cst_30 = arith.constant 5.000000e-01 : f32
    %65 = vector.broadcast %cst_30 : f32 to vector<2x128xf32>
    %66 = arith.mulf %65, %64 : vector<2x128xf32>
    %cst_31 = arith.constant 5.000000e-01 : f32
    %67 = vector.broadcast %cst_31 : f32 to vector<2x128xf32>
    %68 = arith.addf %66, %67 : vector<2x128xf32>
    %69 = arith.select %7, %64, %68 : vector<2x128xi1>, vector<2x128xf32>
    %70 = vector.extract_strided_slice %69 {offsets = [0, 0], sizes = [2, 32], strides = [1, 1]} : vector<2x128xf32> to vector<2x32xf32>
    %71 = vector.extract_strided_slice %69 {offsets = [0, 32], sizes = [2, 32], strides = [1, 1]} : vector<2x128xf32> to vector<2x32xf32>
    %72 = vector.extract_strided_slice %69 {offsets = [0, 64], sizes = [2, 32], strides = [1, 1]} : vector<2x128xf32> to vector<2x32xf32>
    %73 = vector.extract_strided_slice %69 {offsets = [0, 96], sizes = [2, 32], strides = [1, 1]} : vector<2x128xf32> to vector<2x32xf32>
    %74 = arith.mulf %71, %58 : vector<2x32xf32>
    %75 = arith.mulf %70, %72 : vector<2x32xf32>
    %76 = arith.addf %74, %75 : vector<2x32xf32>
    %77 = math.tanh %76 : vector<2x32xf32>
    %78 = arith.mulf %73, %77 : vector<2x32xf32>
    %79 = vector.extract_strided_slice %61 {offsets = [0, 128], sizes = [2, 128], strides = [1, 1]} : vector<2x256xf32> to vector<2x128xf32>
    %80 = arith.addf %79, %44 : vector<2x128xf32>
    %cst_32 = arith.constant dense<0.000000e+00> : vector<2x128xf32>
    %81 = tpu.matmul %45, %22, %cst_32 {dimension_numbers = #tpu.dot_dimension_numbers<[1], [0], [0], [1], [0, 0, 1, 1], [], []>} : vector<2x32xf32>, vector<32x128xf32>, vector<2x128xf32> -> vector<2x128xf32>
    %82 = arith.addf %80, %81 : vector<2x128xf32>
    %83 = math.tanh %82 : vector<2x128xf32>
    %cst_33 = arith.constant 5.000000e-01 : f32
    %84 = vector.broadcast %cst_33 : f32 to vector<2x128xf32>
    %85 = arith.mulf %84, %83 : vector<2x128xf32>
    %cst_34 = arith.constant 5.000000e-01 : f32
    %86 = vector.broadcast %cst_34 : f32 to vector<2x128xf32>
    %87 = arith.addf %85, %86 : vector<2x128xf32>
    %88 = arith.select %7, %83, %87 : vector<2x128xi1>, vector<2x128xf32>
    %89 = vector.extract_strided_slice %88 {offsets = [0, 0], sizes = [2, 32], strides = [1, 1]} : vector<2x128xf32> to vector<2x32xf32>
    %90 = vector.extract_strided_slice %88 {offsets = [0, 32], sizes = [2, 32], strides = [1, 1]} : vector<2x128xf32> to vector<2x32xf32>
    %91 = vector.extract_strided_slice %88 {offsets = [0, 64], sizes = [2, 32], strides = [1, 1]} : vector<2x128xf32> to vector<2x32xf32>
    %92 = vector.extract_strided_slice %88 {offsets = [0, 96], sizes = [2, 32], strides = [1, 1]} : vector<2x128xf32> to vector<2x32xf32>
    %93 = arith.mulf %90, %45 : vector<2x32xf32>
    %94 = arith.mulf %89, %91 : vector<2x32xf32>
    %95 = arith.addf %93, %94 : vector<2x32xf32>
    %96 = math.tanh %95 : vector<2x32xf32>
    %97 = arith.mulf %92, %96 : vector<2x32xf32>
    %c1_i32_35 = arith.constant 1 : i32
    %98 = arith.subi %c1_i32, %c1_i32_35 : i32
    %c2_i32 = arith.constant 2 : i32
    %99 = arith.muli %98, %c2_i32 : i32
    %100 = tpu.assume_multiple %99, 2 : i32
    %101 = arith.index_cast %100 : i32 to index
    %c0_36 = arith.constant 0 : index
    %102 = vector.load %arg8[%101, %c0_36] : memref<16x32xf32, #tpu.memory_space<vmem>>, vector<2x32xf32>
    tpu.vector_store %arg8[%101, %c0_36], %97 {strides = array<i32>} : memref<16x32xf32, #tpu.memory_space<vmem>>, vector<2x32xf32>,
    %c2_i32_37 = arith.constant 2 : i32
    %cst_38 = arith.constant dense<0.000000e+00> : vector<2x256xf32>
    %103 = tpu.matmul %78, %23, %cst_38 {dimension_numbers = #tpu.dot_dimension_numbers<[1], [0], [0], [1], [0, 0, 1, 1], [], []>} : vector<2x32xf32>, vector<32x256xf32>, vector<2x256xf32> -> vector<2x256xf32>
    %104 = vector.extract_strided_slice %103 {offsets = [0, 0], sizes = [2, 128], strides = [1, 1]} : vector<2x256xf32> to vector<2x128xf32>
    %105 = arith.addf %104, %36 : vector<2x128xf32>
    %106 = math.tanh %105 : vector<2x128xf32>
    %cst_39 = arith.constant 5.000000e-01 : f32
    %107 = vector.broadcast %cst_39 : f32 to vector<2x128xf32>
    %108 = arith.mulf %107, %106 : vector<2x128xf32>
    %cst_40 = arith.constant 5.000000e-01 : f32
    %109 = vector.broadcast %cst_40 : f32 to vector<2x128xf32>
    %110 = arith.addf %108, %109 : vector<2x128xf32>
    %111 = arith.select %7, %106, %110 : vector<2x128xi1>, vector<2x128xf32>
    %112 = vector.extract_strided_slice %111 {offsets = [0, 0], sizes = [2, 32], strides = [1, 1]} : vector<2x128xf32> to vector<2x32xf32>
    %113 = vector.extract_strided_slice %111 {offsets = [0, 32], sizes = [2, 32], strides = [1, 1]} : vector<2x128xf32> to vector<2x32xf32>
    %114 = vector.extract_strided_slice %111 {offsets = [0, 64], sizes = [2, 32], strides = [1, 1]} : vector<2x128xf32> to vector<2x32xf32>
    %115 = vector.extract_strided_slice %111 {offsets = [0, 96], sizes = [2, 32], strides = [1, 1]} : vector<2x128xf32> to vector<2x32xf32>
    %116 = arith.mulf %113, %76 : vector<2x32xf32>
    %117 = arith.mulf %112, %114 : vector<2x32xf32>
    %118 = arith.addf %116, %117 : vector<2x32xf32>
    %119 = math.tanh %118 : vector<2x32xf32>
    %120 = arith.mulf %115, %119 : vector<2x32xf32>
    %121 = vector.extract_strided_slice %103 {offsets = [0, 128], sizes = [2, 128], strides = [1, 1]} : vector<2x256xf32> to vector<2x128xf32>
    %122 = arith.addf %121, %44 : vector<2x128xf32>
    %cst_41 = arith.constant dense<0.000000e+00> : vector<2x128xf32>
    %123 = tpu.matmul %97, %22, %cst_41 {dimension_numbers = #tpu.dot_dimension_numbers<[1], [0], [0], [1], [0, 0, 1, 1], [], []>} : vector<2x32xf32>, vector<32x128xf32>, vector<2x128xf32> -> vector<2x128xf32>
    %124 = arith.addf %122, %123 : vector<2x128xf32>
    %125 = math.tanh %124 : vector<2x128xf32>
    %cst_42 = arith.constant 5.000000e-01 : f32
    %126 = vector.broadcast %cst_42 : f32 to vector<2x128xf32>
    %127 = arith.mulf %126, %125 : vector<2x128xf32>
    %cst_43 = arith.constant 5.000000e-01 : f32
    %128 = vector.broadcast %cst_43 : f32 to vector<2x128xf32>
    %129 = arith.addf %127, %128 : vector<2x128xf32>
    %130 = arith.select %7, %125, %129 : vector<2x128xi1>, vector<2x128xf32>
    %131 = vector.extract_strided_slice %130 {offsets = [0, 0], sizes = [2, 32], strides = [1, 1]} : vector<2x128xf32> to vector<2x32xf32>
    %132 = vector.extract_strided_slice %130 {offsets = [0, 32], sizes = [2, 32], strides = [1, 1]} : vector<2x128xf32> to vector<2x32xf32>
    %133 = vector.extract_strided_slice %130 {offsets = [0, 64], sizes = [2, 32], strides = [1, 1]} : vector<2x128xf32> to vector<2x32xf32>
    %134 = vector.extract_strided_slice %130 {offsets = [0, 96], sizes = [2, 32], strides = [1, 1]} : vector<2x128xf32> to vector<2x32xf32>
    %135 = arith.mulf %132, %95 : vector<2x32xf32>
    %136 = arith.mulf %131, %133 : vector<2x32xf32>
    %137 = arith.addf %135, %136 : vector<2x32xf32>
    %138 = math.tanh %137 : vector<2x32xf32>
    %139 = arith.mulf %134, %138 : vector<2x32xf32>
    %c1_i32_44 = arith.constant 1 : i32
    %140 = arith.subi %c2_i32_37, %c1_i32_44 : i32
    %c2_i32_45 = arith.constant 2 : i32
    %141 = arith.muli %140, %c2_i32_45 : i32
    %142 = tpu.assume_multiple %141, 2 : i32
    %143 = arith.index_cast %142 : i32 to index
    %c0_46 = arith.constant 0 : index
    %144 = vector.load %arg8[%143, %c0_46] : memref<16x32xf32, #tpu.memory_space<vmem>>, vector<2x32xf32>
    tpu.vector_store %arg8[%143, %c0_46], %139 {strides = array<i32>} : memref<16x32xf32, #tpu.memory_space<vmem>>, vector<2x32xf32>,
    %c3_i32 = arith.constant 3 : i32
    %cst_47 = arith.constant dense<0.000000e+00> : vector<2x256xf32>
    %145 = tpu.matmul %120, %23, %cst_47 {dimension_numbers = #tpu.dot_dimension_numbers<[1], [0], [0], [1], [0, 0, 1, 1], [], []>} : vector<2x32xf32>, vector<32x256xf32>, vector<2x256xf32> -> vector<2x256xf32>
    %146 = vector.extract_strided_slice %145 {offsets = [0, 0], sizes = [2, 128], strides = [1, 1]} : vector<2x256xf32> to vector<2x128xf32>
    %147 = arith.addf %146, %36 : vector<2x128xf32>
    %148 = math.tanh %147 : vector<2x128xf32>
    %cst_48 = arith.constant 5.000000e-01 : f32
    %149 = vector.broadcast %cst_48 : f32 to vector<2x128xf32>
    %150 = arith.mulf %149, %148 : vector<2x128xf32>
    %cst_49 = arith.constant 5.000000e-01 : f32
    %151 = vector.broadcast %cst_49 : f32 to vector<2x128xf32>
    %152 = arith.addf %150, %151 : vector<2x128xf32>
    %153 = arith.select %7, %148, %152 : vector<2x128xi1>, vector<2x128xf32>
    %154 = vector.extract_strided_slice %153 {offsets = [0, 0], sizes = [2, 32], strides = [1, 1]} : vector<2x128xf32> to vector<2x32xf32>
    %155 = vector.extract_strided_slice %153 {offsets = [0, 32], sizes = [2, 32], strides = [1, 1]} : vector<2x128xf32> to vector<2x32xf32>
    %156 = vector.extract_strided_slice %153 {offsets = [0, 64], sizes = [2, 32], strides = [1, 1]} : vector<2x128xf32> to vector<2x32xf32>
    %157 = vector.extract_strided_slice %153 {offsets = [0, 96], sizes = [2, 32], strides = [1, 1]} : vector<2x128xf32> to vector<2x32xf32>
    %158 = arith.mulf %155, %118 : vector<2x32xf32>
    %159 = arith.mulf %154, %156 : vector<2x32xf32>
    %160 = arith.addf %158, %159 : vector<2x32xf32>
    %161 = math.tanh %160 : vector<2x32xf32>
    %162 = arith.mulf %157, %161 : vector<2x32xf32>
    %163 = vector.extract_strided_slice %145 {offsets = [0, 128], sizes = [2, 128], strides = [1, 1]} : vector<2x256xf32> to vector<2x128xf32>
    %164 = arith.addf %163, %44 : vector<2x128xf32>
    %cst_50 = arith.constant dense<0.000000e+00> : vector<2x128xf32>
    %165 = tpu.matmul %139, %22, %cst_50 {dimension_numbers = #tpu.dot_dimension_numbers<[1], [0], [0], [1], [0, 0, 1, 1], [], []>} : vector<2x32xf32>, vector<32x128xf32>, vector<2x128xf32> -> vector<2x128xf32>
    %166 = arith.addf %164, %165 : vector<2x128xf32>
    %167 = math.tanh %166 : vector<2x128xf32>
    %cst_51 = arith.constant 5.000000e-01 : f32
    %168 = vector.broadcast %cst_51 : f32 to vector<2x128xf32>
    %169 = arith.mulf %168, %167 : vector<2x128xf32>
    %cst_52 = arith.constant 5.000000e-01 : f32
    %170 = vector.broadcast %cst_52 : f32 to vector<2x128xf32>
    %171 = arith.addf %169, %170 : vector<2x128xf32>
    %172 = arith.select %7, %167, %171 : vector<2x128xi1>, vector<2x128xf32>
    %173 = vector.extract_strided_slice %172 {offsets = [0, 0], sizes = [2, 32], strides = [1, 1]} : vector<2x128xf32> to vector<2x32xf32>
    %174 = vector.extract_strided_slice %172 {offsets = [0, 32], sizes = [2, 32], strides = [1, 1]} : vector<2x128xf32> to vector<2x32xf32>
    %175 = vector.extract_strided_slice %172 {offsets = [0, 64], sizes = [2, 32], strides = [1, 1]} : vector<2x128xf32> to vector<2x32xf32>
    %176 = vector.extract_strided_slice %172 {offsets = [0, 96], sizes = [2, 32], strides = [1, 1]} : vector<2x128xf32> to vector<2x32xf32>
    %177 = arith.mulf %174, %137 : vector<2x32xf32>
    %178 = arith.mulf %173, %175 : vector<2x32xf32>
    %179 = arith.addf %177, %178 : vector<2x32xf32>
    %180 = math.tanh %179 : vector<2x32xf32>
    %181 = arith.mulf %176, %180 : vector<2x32xf32>
    %c1_i32_53 = arith.constant 1 : i32
    %182 = arith.subi %c3_i32, %c1_i32_53 : i32
    %c2_i32_54 = arith.constant 2 : i32
    %183 = arith.muli %182, %c2_i32_54 : i32
    %184 = tpu.assume_multiple %183, 2 : i32
    %185 = arith.index_cast %184 : i32 to index
    %c0_55 = arith.constant 0 : index
    %186 = vector.load %arg8[%185, %c0_55] : memref<16x32xf32, #tpu.memory_space<vmem>>, vector<2x32xf32>
    tpu.vector_store %arg8[%185, %c0_55], %181 {strides = array<i32>} : memref<16x32xf32, #tpu.memory_space<vmem>>, vector<2x32xf32>,
    %c4_i32 = arith.constant 4 : i32
    %cst_56 = arith.constant dense<0.000000e+00> : vector<2x256xf32>
    %187 = tpu.matmul %162, %23, %cst_56 {dimension_numbers = #tpu.dot_dimension_numbers<[1], [0], [0], [1], [0, 0, 1, 1], [], []>} : vector<2x32xf32>, vector<32x256xf32>, vector<2x256xf32> -> vector<2x256xf32>
    %188 = vector.extract_strided_slice %187 {offsets = [0, 0], sizes = [2, 128], strides = [1, 1]} : vector<2x256xf32> to vector<2x128xf32>
    %189 = arith.addf %188, %36 : vector<2x128xf32>
    %190 = math.tanh %189 : vector<2x128xf32>
    %cst_57 = arith.constant 5.000000e-01 : f32
    %191 = vector.broadcast %cst_57 : f32 to vector<2x128xf32>
    %192 = arith.mulf %191, %190 : vector<2x128xf32>
    %cst_58 = arith.constant 5.000000e-01 : f32
    %193 = vector.broadcast %cst_58 : f32 to vector<2x128xf32>
    %194 = arith.addf %192, %193 : vector<2x128xf32>
    %195 = arith.select %7, %190, %194 : vector<2x128xi1>, vector<2x128xf32>
    %196 = vector.extract_strided_slice %195 {offsets = [0, 0], sizes = [2, 32], strides = [1, 1]} : vector<2x128xf32> to vector<2x32xf32>
    %197 = vector.extract_strided_slice %195 {offsets = [0, 32], sizes = [2, 32], strides = [1, 1]} : vector<2x128xf32> to vector<2x32xf32>
    %198 = vector.extract_strided_slice %195 {offsets = [0, 64], sizes = [2, 32], strides = [1, 1]} : vector<2x128xf32> to vector<2x32xf32>
    %199 = vector.extract_strided_slice %195 {offsets = [0, 96], sizes = [2, 32], strides = [1, 1]} : vector<2x128xf32> to vector<2x32xf32>
    %200 = arith.mulf %197, %160 : vector<2x32xf32>
    %201 = arith.mulf %196, %198 : vector<2x32xf32>
    %202 = arith.addf %200, %201 : vector<2x32xf32>
    %203 = math.tanh %202 : vector<2x32xf32>
    %204 = arith.mulf %199, %203 : vector<2x32xf32>
    %205 = vector.extract_strided_slice %187 {offsets = [0, 128], sizes = [2, 128], strides = [1, 1]} : vector<2x256xf32> to vector<2x128xf32>
    %206 = arith.addf %205, %44 : vector<2x128xf32>
    %cst_59 = arith.constant dense<0.000000e+00> : vector<2x128xf32>
    %207 = tpu.matmul %181, %22, %cst_59 {dimension_numbers = #tpu.dot_dimension_numbers<[1], [0], [0], [1], [0, 0, 1, 1], [], []>} : vector<2x32xf32>, vector<32x128xf32>, vector<2x128xf32> -> vector<2x128xf32>
    %208 = arith.addf %206, %207 : vector<2x128xf32>
    %209 = math.tanh %208 : vector<2x128xf32>
    %cst_60 = arith.constant 5.000000e-01 : f32
    %210 = vector.broadcast %cst_60 : f32 to vector<2x128xf32>
    %211 = arith.mulf %210, %209 : vector<2x128xf32>
    %cst_61 = arith.constant 5.000000e-01 : f32
    %212 = vector.broadcast %cst_61 : f32 to vector<2x128xf32>
    %213 = arith.addf %211, %212 : vector<2x128xf32>
    %214 = arith.select %7, %209, %213 : vector<2x128xi1>, vector<2x128xf32>
    %215 = vector.extract_strided_slice %214 {offsets = [0, 0], sizes = [2, 32], strides = [1, 1]} : vector<2x128xf32> to vector<2x32xf32>
    %216 = vector.extract_strided_slice %214 {offsets = [0, 32], sizes = [2, 32], strides = [1, 1]} : vector<2x128xf32> to vector<2x32xf32>
    %217 = vector.extract_strided_slice %214 {offsets = [0, 64], sizes = [2, 32], strides = [1, 1]} : vector<2x128xf32> to vector<2x32xf32>
    %218 = vector.extract_strided_slice %214 {offsets = [0, 96], sizes = [2, 32], strides = [1, 1]} : vector<2x128xf32> to vector<2x32xf32>
    %219 = arith.mulf %216, %179 : vector<2x32xf32>
    %220 = arith.mulf %215, %217 : vector<2x32xf32>
    %221 = arith.addf %219, %220 : vector<2x32xf32>
    %222 = math.tanh %221 : vector<2x32xf32>
    %223 = arith.mulf %218, %222 : vector<2x32xf32>
    %c1_i32_62 = arith.constant 1 : i32
    %224 = arith.subi %c4_i32, %c1_i32_62 : i32
    %c2_i32_63 = arith.constant 2 : i32
    %225 = arith.muli %224, %c2_i32_63 : i32
    %226 = tpu.assume_multiple %225, 2 : i32
    %227 = arith.index_cast %226 : i32 to index
    %c0_64 = arith.constant 0 : index
    %228 = vector.load %arg8[%227, %c0_64] : memref<16x32xf32, #tpu.memory_space<vmem>>, vector<2x32xf32>
    tpu.vector_store %arg8[%227, %c0_64], %223 {strides = array<i32>} : memref<16x32xf32, #tpu.memory_space<vmem>>, vector<2x32xf32>,
    %c5_i32 = arith.constant 5 : i32
    %cst_65 = arith.constant dense<0.000000e+00> : vector<2x256xf32>
    %229 = tpu.matmul %204, %23, %cst_65 {dimension_numbers = #tpu.dot_dimension_numbers<[1], [0], [0], [1], [0, 0, 1, 1], [], []>} : vector<2x32xf32>, vector<32x256xf32>, vector<2x256xf32> -> vector<2x256xf32>
    %230 = vector.extract_strided_slice %229 {offsets = [0, 0], sizes = [2, 128], strides = [1, 1]} : vector<2x256xf32> to vector<2x128xf32>
    %231 = arith.addf %230, %36 : vector<2x128xf32>
    %232 = math.tanh %231 : vector<2x128xf32>
    %cst_66 = arith.constant 5.000000e-01 : f32
    %233 = vector.broadcast %cst_66 : f32 to vector<2x128xf32>
    %234 = arith.mulf %233, %232 : vector<2x128xf32>
    %cst_67 = arith.constant 5.000000e-01 : f32
    %235 = vector.broadcast %cst_67 : f32 to vector<2x128xf32>
    %236 = arith.addf %234, %235 : vector<2x128xf32>
    %237 = arith.select %7, %232, %236 : vector<2x128xi1>, vector<2x128xf32>
    %238 = vector.extract_strided_slice %237 {offsets = [0, 0], sizes = [2, 32], strides = [1, 1]} : vector<2x128xf32> to vector<2x32xf32>
    %239 = vector.extract_strided_slice %237 {offsets = [0, 32], sizes = [2, 32], strides = [1, 1]} : vector<2x128xf32> to vector<2x32xf32>
    %240 = vector.extract_strided_slice %237 {offsets = [0, 64], sizes = [2, 32], strides = [1, 1]} : vector<2x128xf32> to vector<2x32xf32>
    %241 = vector.extract_strided_slice %237 {offsets = [0, 96], sizes = [2, 32], strides = [1, 1]} : vector<2x128xf32> to vector<2x32xf32>
    %242 = arith.mulf %239, %202 : vector<2x32xf32>
    %243 = arith.mulf %238, %240 : vector<2x32xf32>
    %244 = arith.addf %242, %243 : vector<2x32xf32>
    %245 = math.tanh %244 : vector<2x32xf32>
    %246 = arith.mulf %241, %245 : vector<2x32xf32>
    %247 = vector.extract_strided_slice %229 {offsets = [0, 128], sizes = [2, 128], strides = [1, 1]} : vector<2x256xf32> to vector<2x128xf32>
    %248 = arith.addf %247, %44 : vector<2x128xf32>
    %cst_68 = arith.constant dense<0.000000e+00> : vector<2x128xf32>
    %249 = tpu.matmul %223, %22, %cst_68 {dimension_numbers = #tpu.dot_dimension_numbers<[1], [0], [0], [1], [0, 0, 1, 1], [], []>} : vector<2x32xf32>, vector<32x128xf32>, vector<2x128xf32> -> vector<2x128xf32>
    %250 = arith.addf %248, %249 : vector<2x128xf32>
    %251 = math.tanh %250 : vector<2x128xf32>
    %cst_69 = arith.constant 5.000000e-01 : f32
    %252 = vector.broadcast %cst_69 : f32 to vector<2x128xf32>
    %253 = arith.mulf %252, %251 : vector<2x128xf32>
    %cst_70 = arith.constant 5.000000e-01 : f32
    %254 = vector.broadcast %cst_70 : f32 to vector<2x128xf32>
    %255 = arith.addf %253, %254 : vector<2x128xf32>
    %256 = arith.select %7, %251, %255 : vector<2x128xi1>, vector<2x128xf32>
    %257 = vector.extract_strided_slice %256 {offsets = [0, 0], sizes = [2, 32], strides = [1, 1]} : vector<2x128xf32> to vector<2x32xf32>
    %258 = vector.extract_strided_slice %256 {offsets = [0, 32], sizes = [2, 32], strides = [1, 1]} : vector<2x128xf32> to vector<2x32xf32>
    %259 = vector.extract_strided_slice %256 {offsets = [0, 64], sizes = [2, 32], strides = [1, 1]} : vector<2x128xf32> to vector<2x32xf32>
    %260 = vector.extract_strided_slice %256 {offsets = [0, 96], sizes = [2, 32], strides = [1, 1]} : vector<2x128xf32> to vector<2x32xf32>
    %261 = arith.mulf %258, %221 : vector<2x32xf32>
    %262 = arith.mulf %257, %259 : vector<2x32xf32>
    %263 = arith.addf %261, %262 : vector<2x32xf32>
    %264 = math.tanh %263 : vector<2x32xf32>
    %265 = arith.mulf %260, %264 : vector<2x32xf32>
    %c1_i32_71 = arith.constant 1 : i32
    %266 = arith.subi %c5_i32, %c1_i32_71 : i32
    %c2_i32_72 = arith.constant 2 : i32
    %267 = arith.muli %266, %c2_i32_72 : i32
    %268 = tpu.assume_multiple %267, 2 : i32
    %269 = arith.index_cast %268 : i32 to index
    %c0_73 = arith.constant 0 : index
    %270 = vector.load %arg8[%269, %c0_73] : memref<16x32xf32, #tpu.memory_space<vmem>>, vector<2x32xf32>
    tpu.vector_store %arg8[%269, %c0_73], %265 {strides = array<i32>} : memref<16x32xf32, #tpu.memory_space<vmem>>, vector<2x32xf32>,
    %c6_i32 = arith.constant 6 : i32
    %cst_74 = arith.constant dense<0.000000e+00> : vector<2x256xf32>
    %271 = tpu.matmul %246, %23, %cst_74 {dimension_numbers = #tpu.dot_dimension_numbers<[1], [0], [0], [1], [0, 0, 1, 1], [], []>} : vector<2x32xf32>, vector<32x256xf32>, vector<2x256xf32> -> vector<2x256xf32>
    %272 = vector.extract_strided_slice %271 {offsets = [0, 0], sizes = [2, 128], strides = [1, 1]} : vector<2x256xf32> to vector<2x128xf32>
    %273 = arith.addf %272, %36 : vector<2x128xf32>
    %274 = math.tanh %273 : vector<2x128xf32>
    %cst_75 = arith.constant 5.000000e-01 : f32
    %275 = vector.broadcast %cst_75 : f32 to vector<2x128xf32>
    %276 = arith.mulf %275, %274 : vector<2x128xf32>
    %cst_76 = arith.constant 5.000000e-01 : f32
    %277 = vector.broadcast %cst_76 : f32 to vector<2x128xf32>
    %278 = arith.addf %276, %277 : vector<2x128xf32>
    %279 = arith.select %7, %274, %278 : vector<2x128xi1>, vector<2x128xf32>
    %280 = vector.extract_strided_slice %279 {offsets = [0, 0], sizes = [2, 32], strides = [1, 1]} : vector<2x128xf32> to vector<2x32xf32>
    %281 = vector.extract_strided_slice %279 {offsets = [0, 32], sizes = [2, 32], strides = [1, 1]} : vector<2x128xf32> to vector<2x32xf32>
    %282 = vector.extract_strided_slice %279 {offsets = [0, 64], sizes = [2, 32], strides = [1, 1]} : vector<2x128xf32> to vector<2x32xf32>
    %283 = vector.extract_strided_slice %279 {offsets = [0, 96], sizes = [2, 32], strides = [1, 1]} : vector<2x128xf32> to vector<2x32xf32>
    %284 = arith.mulf %281, %244 : vector<2x32xf32>
    %285 = arith.mulf %280, %282 : vector<2x32xf32>
    %286 = arith.addf %284, %285 : vector<2x32xf32>
    %287 = math.tanh %286 : vector<2x32xf32>
    %288 = arith.mulf %283, %287 : vector<2x32xf32>
    %289 = vector.extract_strided_slice %271 {offsets = [0, 128], sizes = [2, 128], strides = [1, 1]} : vector<2x256xf32> to vector<2x128xf32>
    %290 = arith.addf %289, %44 : vector<2x128xf32>
    %cst_77 = arith.constant dense<0.000000e+00> : vector<2x128xf32>
    %291 = tpu.matmul %265, %22, %cst_77 {dimension_numbers = #tpu.dot_dimension_numbers<[1], [0], [0], [1], [0, 0, 1, 1], [], []>} : vector<2x32xf32>, vector<32x128xf32>, vector<2x128xf32> -> vector<2x128xf32>
    %292 = arith.addf %290, %291 : vector<2x128xf32>
    %293 = math.tanh %292 : vector<2x128xf32>
    %cst_78 = arith.constant 5.000000e-01 : f32
    %294 = vector.broadcast %cst_78 : f32 to vector<2x128xf32>
    %295 = arith.mulf %294, %293 : vector<2x128xf32>
    %cst_79 = arith.constant 5.000000e-01 : f32
    %296 = vector.broadcast %cst_79 : f32 to vector<2x128xf32>
    %297 = arith.addf %295, %296 : vector<2x128xf32>
    %298 = arith.select %7, %293, %297 : vector<2x128xi1>, vector<2x128xf32>
    %299 = vector.extract_strided_slice %298 {offsets = [0, 0], sizes = [2, 32], strides = [1, 1]} : vector<2x128xf32> to vector<2x32xf32>
    %300 = vector.extract_strided_slice %298 {offsets = [0, 32], sizes = [2, 32], strides = [1, 1]} : vector<2x128xf32> to vector<2x32xf32>
    %301 = vector.extract_strided_slice %298 {offsets = [0, 64], sizes = [2, 32], strides = [1, 1]} : vector<2x128xf32> to vector<2x32xf32>
    %302 = vector.extract_strided_slice %298 {offsets = [0, 96], sizes = [2, 32], strides = [1, 1]} : vector<2x128xf32> to vector<2x32xf32>
    %303 = arith.mulf %300, %263 : vector<2x32xf32>
    %304 = arith.mulf %299, %301 : vector<2x32xf32>
    %305 = arith.addf %303, %304 : vector<2x32xf32>
    %306 = math.tanh %305 : vector<2x32xf32>
    %307 = arith.mulf %302, %306 : vector<2x32xf32>
    %c1_i32_80 = arith.constant 1 : i32
    %308 = arith.subi %c6_i32, %c1_i32_80 : i32
    %c2_i32_81 = arith.constant 2 : i32
    %309 = arith.muli %308, %c2_i32_81 : i32
    %310 = tpu.assume_multiple %309, 2 : i32
    %311 = arith.index_cast %310 : i32 to index
    %c0_82 = arith.constant 0 : index
    %312 = vector.load %arg8[%311, %c0_82] : memref<16x32xf32, #tpu.memory_space<vmem>>, vector<2x32xf32>
    tpu.vector_store %arg8[%311, %c0_82], %307 {strides = array<i32>} : memref<16x32xf32, #tpu.memory_space<vmem>>, vector<2x32xf32>,
    %c7_i32 = arith.constant 7 : i32
    %cst_83 = arith.constant dense<0.000000e+00> : vector<2x256xf32>
    %313 = tpu.matmul %288, %23, %cst_83 {dimension_numbers = #tpu.dot_dimension_numbers<[1], [0], [0], [1], [0, 0, 1, 1], [], []>} : vector<2x32xf32>, vector<32x256xf32>, vector<2x256xf32> -> vector<2x256xf32>
    %314 = vector.extract_strided_slice %313 {offsets = [0, 0], sizes = [2, 128], strides = [1, 1]} : vector<2x256xf32> to vector<2x128xf32>
    %315 = arith.addf %314, %36 : vector<2x128xf32>
    %316 = math.tanh %315 : vector<2x128xf32>
    %cst_84 = arith.constant 5.000000e-01 : f32
    %317 = vector.broadcast %cst_84 : f32 to vector<2x128xf32>
    %318 = arith.mulf %317, %316 : vector<2x128xf32>
    %cst_85 = arith.constant 5.000000e-01 : f32
    %319 = vector.broadcast %cst_85 : f32 to vector<2x128xf32>
    %320 = arith.addf %318, %319 : vector<2x128xf32>
    %321 = arith.select %7, %316, %320 : vector<2x128xi1>, vector<2x128xf32>
    %322 = vector.extract_strided_slice %321 {offsets = [0, 0], sizes = [2, 32], strides = [1, 1]} : vector<2x128xf32> to vector<2x32xf32>
    %323 = vector.extract_strided_slice %321 {offsets = [0, 32], sizes = [2, 32], strides = [1, 1]} : vector<2x128xf32> to vector<2x32xf32>
    %324 = vector.extract_strided_slice %321 {offsets = [0, 64], sizes = [2, 32], strides = [1, 1]} : vector<2x128xf32> to vector<2x32xf32>
    %325 = vector.extract_strided_slice %321 {offsets = [0, 96], sizes = [2, 32], strides = [1, 1]} : vector<2x128xf32> to vector<2x32xf32>
    %326 = arith.mulf %323, %286 : vector<2x32xf32>
    %327 = arith.mulf %322, %324 : vector<2x32xf32>
    %328 = arith.addf %326, %327 : vector<2x32xf32>
    %329 = math.tanh %328 : vector<2x32xf32>
    %330 = arith.mulf %325, %329 : vector<2x32xf32>
    %331 = vector.extract_strided_slice %313 {offsets = [0, 128], sizes = [2, 128], strides = [1, 1]} : vector<2x256xf32> to vector<2x128xf32>
    %332 = arith.addf %331, %44 : vector<2x128xf32>
    %cst_86 = arith.constant dense<0.000000e+00> : vector<2x128xf32>
    %333 = tpu.matmul %307, %22, %cst_86 {dimension_numbers = #tpu.dot_dimension_numbers<[1], [0], [0], [1], [0, 0, 1, 1], [], []>} : vector<2x32xf32>, vector<32x128xf32>, vector<2x128xf32> -> vector<2x128xf32>
    %334 = arith.addf %332, %333 : vector<2x128xf32>
    %335 = math.tanh %334 : vector<2x128xf32>
    %cst_87 = arith.constant 5.000000e-01 : f32
    %336 = vector.broadcast %cst_87 : f32 to vector<2x128xf32>
    %337 = arith.mulf %336, %335 : vector<2x128xf32>
    %cst_88 = arith.constant 5.000000e-01 : f32
    %338 = vector.broadcast %cst_88 : f32 to vector<2x128xf32>
    %339 = arith.addf %337, %338 : vector<2x128xf32>
    %340 = arith.select %7, %335, %339 : vector<2x128xi1>, vector<2x128xf32>
    %341 = vector.extract_strided_slice %340 {offsets = [0, 0], sizes = [2, 32], strides = [1, 1]} : vector<2x128xf32> to vector<2x32xf32>
    %342 = vector.extract_strided_slice %340 {offsets = [0, 32], sizes = [2, 32], strides = [1, 1]} : vector<2x128xf32> to vector<2x32xf32>
    %343 = vector.extract_strided_slice %340 {offsets = [0, 64], sizes = [2, 32], strides = [1, 1]} : vector<2x128xf32> to vector<2x32xf32>
    %344 = vector.extract_strided_slice %340 {offsets = [0, 96], sizes = [2, 32], strides = [1, 1]} : vector<2x128xf32> to vector<2x32xf32>
    %345 = arith.mulf %342, %305 : vector<2x32xf32>
    %346 = arith.mulf %341, %343 : vector<2x32xf32>
    %347 = arith.addf %345, %346 : vector<2x32xf32>
    %348 = math.tanh %347 : vector<2x32xf32>
    %349 = arith.mulf %344, %348 : vector<2x32xf32>
    %c1_i32_89 = arith.constant 1 : i32
    %350 = arith.subi %c7_i32, %c1_i32_89 : i32
    %c2_i32_90 = arith.constant 2 : i32
    %351 = arith.muli %350, %c2_i32_90 : i32
    %352 = tpu.assume_multiple %351, 2 : i32
    %353 = arith.index_cast %352 : i32 to index
    %c0_91 = arith.constant 0 : index
    %354 = vector.load %arg8[%353, %c0_91] : memref<16x32xf32, #tpu.memory_space<vmem>>, vector<2x32xf32>
    tpu.vector_store %arg8[%353, %c0_91], %349 {strides = array<i32>} : memref<16x32xf32, #tpu.memory_space<vmem>>, vector<2x32xf32>,
    %c7_i32_92 = arith.constant 7 : i32
    %cst_93 = arith.constant dense<0.000000e+00> : vector<2x256xf32>
    %355 = tpu.matmul %330, %23, %cst_93 {dimension_numbers = #tpu.dot_dimension_numbers<[1], [0], [0], [1], [0, 0, 1, 1], [], []>} : vector<2x32xf32>, vector<32x256xf32>, vector<2x256xf32> -> vector<2x256xf32>
    %356 = vector.extract_strided_slice %355 {offsets = [0, 128], sizes = [2, 128], strides = [1, 1]} : vector<2x256xf32> to vector<2x128xf32>
    %357 = arith.addf %356, %44 : vector<2x128xf32>
    %cst_94 = arith.constant dense<0.000000e+00> : vector<2x128xf32>
    %358 = tpu.matmul %349, %22, %cst_94 {dimension_numbers = #tpu.dot_dimension_numbers<[1], [0], [0], [1], [0, 0, 1, 1], [], []>} : vector<2x32xf32>, vector<32x128xf32>, vector<2x128xf32> -> vector<2x128xf32>
    %359 = arith.addf %357, %358 : vector<2x128xf32>
    %360 = math.tanh %359 : vector<2x128xf32>
    %cst_95 = arith.constant 5.000000e-01 : f32
    %361 = vector.broadcast %cst_95 : f32 to vector<2x128xf32>
    %362 = arith.mulf %361, %360 : vector<2x128xf32>
    %cst_96 = arith.constant 5.000000e-01 : f32
    %363 = vector.broadcast %cst_96 : f32 to vector<2x128xf32>
    %364 = arith.addf %362, %363 : vector<2x128xf32>
    %365 = arith.select %7, %360, %364 : vector<2x128xi1>, vector<2x128xf32>
    %366 = vector.extract_strided_slice %365 {offsets = [0, 0], sizes = [2, 32], strides = [1, 1]} : vector<2x128xf32> to vector<2x32xf32>
    %367 = vector.extract_strided_slice %365 {offsets = [0, 32], sizes = [2, 32], strides = [1, 1]} : vector<2x128xf32> to vector<2x32xf32>
    %368 = vector.extract_strided_slice %365 {offsets = [0, 64], sizes = [2, 32], strides = [1, 1]} : vector<2x128xf32> to vector<2x32xf32>
    %369 = vector.extract_strided_slice %365 {offsets = [0, 96], sizes = [2, 32], strides = [1, 1]} : vector<2x128xf32> to vector<2x32xf32>
    %370 = arith.mulf %367, %347 : vector<2x32xf32>
    %371 = arith.mulf %366, %368 : vector<2x32xf32>
    %372 = arith.addf %370, %371 : vector<2x32xf32>
    %373 = math.tanh %372 : vector<2x32xf32>
    %374 = arith.mulf %369, %373 : vector<2x32xf32>
    %c14 = arith.constant 14 : index
    %c0_97 = arith.constant 0 : index
    %375 = vector.load %arg8[%c14, %c0_97] : memref<16x32xf32, #tpu.memory_space<vmem>>, vector<2x32xf32>
    tpu.vector_store %arg8[%c14, %c0_97], %374 {strides = array<i32>} : memref<16x32xf32, #tpu.memory_space<vmem>>, vector<2x32xf32>,
    %c0_98 = arith.constant 0 : index
    %c0_99 = arith.constant 0 : index
    %376 = tpu.strided_load %arg8[%c0_98, %c0_99] {strides = array<i32: 2, 1>} : memref<16x32xf32, #tpu.memory_space<vmem>>, vector<8x32xf32>
    %c0_100 = arith.constant 0 : index
    %c0_101 = arith.constant 0 : index
    %377 = vector.load %arg5[%c0_100, %c0_101] : memref<12x32xf32, #tpu.memory_space<vmem>>, vector<12x32xf32>
    %378 = tpu.transpose %376, [1, 0] : vector<8x32xf32> -> vector<32x8xf32>
    %cst_102 = arith.constant dense<0.000000e+00> : vector<12x8xf32>
    %379 = tpu.matmul %377, %378, %cst_102 {dimension_numbers = #tpu.dot_dimension_numbers<[1], [0], [0], [1], [0, 0, 1, 1], [], []>} : vector<12x32xf32>, vector<32x8xf32>, vector<12x8xf32> -> vector<12x8xf32>
    %c0_103 = arith.constant 0 : index
    %c0_104 = arith.constant 0 : index
    %380 = vector.load %arg6[%c0_103, %c0_104] : memref<12x1xf32, #tpu.memory_space<vmem>>, vector<12x1xf32>
    %381 = vector.broadcast %380 : vector<12x1xf32> to vector<12x8xf32>
    %382 = arith.addf %379, %381 : vector<12x8xf32>
    %c0_105 = arith.constant 0 : index
    %c0_106 = arith.constant 0 : index
    %c0_107 = arith.constant 0 : index
    %383 = vector.load %arg7[%c0_105, %c0_106, %c0_107] : memref<2x12x8xf32, #tpu.memory_space<vmem>>, vector<1x12x8xf32>
    %384 = vector.shape_cast %383 : vector<1x12x8xf32> to vector<12x8xf32>
    %385 = vector.shape_cast %382 : vector<12x8xf32> to vector<1x12x8xf32>
    tpu.vector_store %arg7[%c0_105, %c0_106, %c0_107], %385 {strides = array<i32>} : memref<2x12x8xf32, #tpu.memory_space<vmem>>, vector<1x12x8xf32>,
    %c1_108 = arith.constant 1 : index
    %c0_109 = arith.constant 0 : index
    %386 = tpu.strided_load %arg8[%c1_108, %c0_109] {strides = array<i32: 2, 1>} : memref<16x32xf32, #tpu.memory_space<vmem>>, vector<8x32xf32>
    %c0_110 = arith.constant 0 : index
    %c0_111 = arith.constant 0 : index
    %387 = vector.load %arg5[%c0_110, %c0_111] : memref<12x32xf32, #tpu.memory_space<vmem>>, vector<12x32xf32>
    %388 = tpu.transpose %386, [1, 0] : vector<8x32xf32> -> vector<32x8xf32>
    %cst_112 = arith.constant dense<0.000000e+00> : vector<12x8xf32>
    %389 = tpu.matmul %387, %388, %cst_112 {dimension_numbers = #tpu.dot_dimension_numbers<[1], [0], [0], [1], [0, 0, 1, 1], [], []>} : vector<12x32xf32>, vector<32x8xf32>, vector<12x8xf32> -> vector<12x8xf32>
    %c0_113 = arith.constant 0 : index
    %c0_114 = arith.constant 0 : index
    %390 = vector.load %arg6[%c0_113, %c0_114] : memref<12x1xf32, #tpu.memory_space<vmem>>, vector<12x1xf32>
    %391 = vector.broadcast %390 : vector<12x1xf32> to vector<12x8xf32>
    %392 = arith.addf %389, %391 : vector<12x8xf32>
    %c1_115 = arith.constant 1 : index
    %c0_116 = arith.constant 0 : index
    %c0_117 = arith.constant 0 : index
    %393 = vector.load %arg7[%c1_115, %c0_116, %c0_117] : memref<2x12x8xf32, #tpu.memory_space<vmem>>, vector<1x12x8xf32>
    %394 = vector.shape_cast %393 : vector<1x12x8xf32> to vector<12x8xf32>
    %395 = vector.shape_cast %392 : vector<12x8xf32> to vector<1x12x8xf32>
    tpu.vector_store %arg7[%c1_115, %c0_116, %c0_117], %395 {strides = array<i32>} : memref<2x12x8xf32, #tpu.memory_space<vmem>>, vector<1x12x8xf32>,
    return
  }
}

</mosaic_0001>

<llo_original>
// kernel: tpu_custom_call.1
$region0: #{tpu_custom_call.1}
  #allocation0 [shape = 'u32[]', space=smem, size = 0x4, offset = 0x4, fixed_abs, tag = 'smem constant byte address 0x4 - core index']
  #allocation1 [shape = 'u32[72,128]{1,0:T(1,128)}', space=vmem, size = 0x9000, scoped, tag = 'internal scratch']
  #allocation2 [shape = 'f32[16,32]{1,0:T(8,128)}', space=vmem, size = 0x2000, scoped, tag = 'scratch operand']
  %s0 = inlined_call_operand.vmem [shape: f32[1,32], index: 0, kind: input, shape index: {}]
  %s1 = inlined_call_operand.hbm [shape: f32[2,32,128], index: 1, kind: input, shape index: {}]
  %s2 = inlined_call_operand.hbm [shape: f32[2,32,128], index: 2, kind: input, shape index: {}]
  %s3 = inlined_call_operand.hbm [shape: f32[2,1,128], index: 3, kind: input, shape index: {}]
  %s4 = inlined_call_operand.vmem [shape: f32[2,1,128], index: 4, kind: input, shape index: {}]
  %s5 = inlined_call_operand.vmem [shape: f32[12,32], index: 5, kind: input, shape index: {}]
  %s6 = inlined_call_operand.vmem [shape: f32[12,1], index: 6, kind: input, shape index: {}]
  %s7 = inlined_call_operand.vmem [shape: f32[2,12,8], index: 7, kind: output, shape index: {}]
  %s8 = sld [smem:[#allocation0]]
  $region50: #{tpu_custom_call.1} parent=0
    _
  %s10 = ssub.s32 1, %s8
  %s11 = scalar_select 0, %s10, %s8
  $region1: #{tpu_custom_call.1} parent=0
    #allocation3 [shape = 'u8[32768]{0}', space=vmem, size = 0x8000, scoped, tag = 'input window, operand 1, single buffered']
    #allocation4 [shape = 's32[1]{0}', space=sflag, size = 0x4, scoped, tag = 'scoped memory for tpu_custom_call.1']
    #allocation5 [shape = 'u8[32768]{0}', space=vmem, size = 0x8000, scoped, tag = 'input window, operand 2, single buffered']
    #allocation6 [shape = 's32[1]{0}', space=sflag, size = 0x4, scoped, tag = 'scoped memory for tpu_custom_call.1']
    #allocation7 [shape = 'u8[1024]{0}', space=vmem, size = 0x400, scoped, tag = 'input window, operand 3, single buffered']
    %12 = vsyncpa [#allocation4], 0
    %13 = vsyncpa [#allocation6], 0
    // Predicated region
    $region2: #{tpu_custom_call.1} parent=1 // pred_check
      _
    $region3: #{tpu_custom_call.1} parent=1 // pred_check_branch
      %15 = sbr.rel (0) target = $region5
    $region4: #{tpu_custom_call.1} parent=1 // pred_region
      _
    $region5: #{tpu_custom_call.1} parent=1 // pred_fallthru
      _
    // Predicated region
    $region6: #{tpu_custom_call.1} parent=1 // pred_check
      _
    $region7: #{tpu_custom_call.1} parent=1 // pred_check_branch
      %17 = sbr.rel (0) target = $region9
    $region8: #{tpu_custom_call.1} parent=1 // pred_region
      %19 = vsyncadd [#allocation4], 0
      %s20 = sshll.u32 %s1, 4
      %s21 = int_to_ptr.hbm [resolvable:$true] %s20
      %s22 = sshll.u32 [#allocation3], 4
      %s23 = int_to_ptr.vmem [resolvable:$true] %s22
      %28 = dma.hbm_to_vmem [thread:$0]  %s21, 1024, %s23, [#allocation4], 128, 128, 8
    $region9: #{tpu_custom_call.1} parent=1 // pred_fallthru
      _
    // Predicated region
    $region10: #{tpu_custom_call.1} parent=1 // pred_check
      _
    $region11: #{tpu_custom_call.1} parent=1 // pred_check_branch
      %30 = sbr.rel (0) target = $region13
    $region12: #{tpu_custom_call.1} parent=1 // pred_region
      %32 = vsyncadd [#allocation6], 0
      %s33 = sshll.u32 %s2, 4
      %s34 = int_to_ptr.hbm [resolvable:$true] %s33
      %s35 = sshll.u32 [#allocation5], 4
      %s36 = int_to_ptr.vmem [resolvable:$true] %s35
      %41 = dma.hbm_to_vmem [thread:$0]  %s34, 1024, %s36, [#allocation6], 128, 128, 8
    $region13: #{tpu_custom_call.1} parent=1 // pred_fallthru
      _
    // Predicated region
    $region14: #{tpu_custom_call.1} parent=1 // pred_check
      _
    $region15: #{tpu_custom_call.1} parent=1 // pred_check_branch
      %43 = sbr.rel (0) target = $region17
    $region16: #{tpu_custom_call.1} parent=1 // pred_region
      %45 = vsyncadd [#allocation6], 0
      %s46 = sshll.u32 %s3, 4
      %s47 = int_to_ptr.hbm [resolvable:$true] %s46
      %s48 = sshll.u32 [#allocation7], 4
      %s49 = int_to_ptr.vmem [resolvable:$true] %s48
      %54 = dma.hbm_to_vmem [thread:$0]  %s47, 32, %s49, [#allocation6], 16, 16, 1
    $region17: #{tpu_custom_call.1} parent=1 // pred_fallthru
      _
    // Predicated region
    $region18: #{tpu_custom_call.1} parent=1 // pred_check
      _
    $region19: #{tpu_custom_call.1} parent=1 // pred_check_branch
      %56 = sbr.rel (0) target = $region21
    $region20: #{tpu_custom_call.1} parent=1 // pred_region
      _
    $region21: #{tpu_custom_call.1} parent=1 // pred_fallthru
      _
    // Predicated region
    $region22: #{tpu_custom_call.1} parent=1 // pred_check
      _
    $region23: #{tpu_custom_call.1} parent=1 // pred_check_branch
      %58 = sbr.rel (0) target = $region25
    $region24: #{tpu_custom_call.1} parent=1 // pred_region
      _
    $region25: #{tpu_custom_call.1} parent=1 // pred_fallthru
      _
    // Predicated region
    $region26: #{tpu_custom_call.1} parent=1 // pred_check
      _
    $region27: #{tpu_custom_call.1} parent=1 // pred_check_branch
      %60 = sbr.rel (0) target = $region29
    $region28: #{tpu_custom_call.1} parent=1 // pred_region
      _
    $region29: #{tpu_custom_call.1} parent=1 // pred_fallthru
      _
    // Predicated region
    $region30: #{tpu_custom_call.1} parent=1 // pred_check
      _
    $region31: #{tpu_custom_call.1} parent=1 // pred_check_branch
      %62 = sbr.rel (0) target = $region33
    $region32: #{tpu_custom_call.1} parent=1 // pred_region
      %64 = dma.done [#allocation4], 1024
    $region33: #{tpu_custom_call.1} parent=1 // pred_fallthru
      _
    // Predicated region
    $region34: #{tpu_custom_call.1} parent=1 // pred_check
      _
    $region35: #{tpu_custom_call.1} parent=1 // pred_check_branch
      %66 = sbr.rel (0) target = $region37
    $region36: #{tpu_custom_call.1} parent=1 // pred_region
      %68 = dma.done [#allocation6], 1024
    $region37: #{tpu_custom_call.1} parent=1 // pred_fallthru
      _
    // Predicated region
    $region38: #{tpu_custom_call.1} parent=1 // pred_check
      _
    $region39: #{tpu_custom_call.1} parent=1 // pred_check_branch
      %70 = sbr.rel (0) target = $region41
    $region40: #{tpu_custom_call.1} parent=1 // pred_region
      %72 = dma.done [#allocation6], 32
    $region41: #{tpu_custom_call.1} parent=1 // pred_fallthru
      _
    %v73 = vlaneseq
    %v74 = vand.u32 %v73, 127
    %vm75 = vcmp.ge.s32.totalorder %v74, 64
    %vm76 = vcmp.lt.s32.totalorder %v74, 96
    %vm77 = vmand %vm75, %vm76
    %v78 = vsel %vm77, 1, 0
    %vm79 = vcmp.eq.s32.totalorder %v78, 1
    %v80 = vsel %vm77, 1.0, 0.5
    %v81 = vld [vmem:[#allocation5] sm:$0xff]
    %v82 = vld [vmem:[#allocation5 + $0x8] sm:$0xff]
    %v83 = vld [vmem:[#allocation5 + $0x10] sm:$0xff]
    %v84 = vld [vmem:[#allocation5 + $0x18] sm:$0xff]
    %v85 = vmul.f32 %v81, %v80
    %v86 = vmul.f32 %v82, %v80
    %v87 = vmul.f32 %v83, %v80
    %v88 = vmul.f32 %v84, %v80
    %s89 = scalar_lea.vmem [#allocation3], 32
    %v90 = vld [vmem:[%s89] sm:$0xff]
    %v91 = vld [vmem:[%s89 + $0x8] sm:$0xff]
    %v92 = vld [vmem:[%s89 + $0x10] sm:$0xff]
    %v93 = vld [vmem:[%s89 + $0x18] sm:$0xff]
    %v94 = vmul.f32 %v90, %v80
    %v95 = vmul.f32 %v91, %v80
    %v96 = vmul.f32 %v92, %v80
    %v97 = vmul.f32 %v93, %v80
    %s98 = scalar_lea.vmem [#allocation5], 32
    %v99 = vld [vmem:[%s98] sm:$0xff]
    %v100 = vld [vmem:[%s98 + $0x8] sm:$0xff]
    %v101 = vld [vmem:[%s98 + $0x10] sm:$0xff]
    %v102 = vld [vmem:[%s98 + $0x18] sm:$0xff]
    %v103 = vmul.f32 %v99, %v80
    %v104 = vmul.f32 %v100, %v80
    %v105 = vmul.f32 %v101, %v80
    %v106 = vmul.f32 %v102, %v80
    %v107 = vld [vmem:[%s0] sm:$0x1]
    %v108 = vld [vmem:[#allocation3] sm:$0xff]
    %v109 = vld [vmem:[#allocation3 + $0x8] sm:$0xff]
    %v110 = vld [vmem:[#allocation3 + $0x10] sm:$0xff]
    %v111 = vld [vmem:[#allocation3 + $0x18] sm:$0xff]
    %v112 = vld [vmem:[#allocation7] sm:$0x1]
    %vm113 = vcmask 261120
    %v115 = vsel %vm113, %v107, 0
    %117 = vmatpush.msra.mxu0 0.0
    %118 = vmatpush.msra.mxu0 0.0
    %119 = vmatpush.msra.mxu0 0.0
    %120 = vmatpush.msra.mxu0 0.0
    %121 = vmatpush.msra.mxu0 0.0
    %122 = vmatpush.msra.mxu0 0.0
    %123 = vmatpush.msra.mxu0 0.0
    %124 = vmatpush.msra.mxu0 0.0
    %125 = vmatpush.msra.mxu0 0.0
    %126 = vmatpush.msra.mxu0 0.0
    %127 = vmatpush.msra.mxu0 0.0
    %128 = vmatpush.msra.mxu0 0.0
    %129 = vmatpush.msra.mxu0 %v111
    %130 = vmatpush.msra.mxu0 %v110
    %131 = vmatpush.msra.mxu0 %v109
    %132 = vmatpush.msra.mxu0 %v108
    %133 = vmatmul.f32.gmra.mxu0 %v115
    %v134 = vpop.f32.mrf.mxu0
    %v135 = vadd.f32 %v112, %v134
    %136 = vdwg.mxu0
    %v137 = vld [vmem:[%s4] sm:$0x1]
    %v138 = vadd.f32 %v135, %v137
    %v139 = vmul.f32 %v138, %v80
    %v140 = vperm.slane %v139, 0
    %s141 = scalar_lea.vmem [#allocation7], 1
    %v142 = vld [vmem:[%s141] sm:$0x1]
    %s143 = scalar_lea.vmem %s4, 1
    %v144 = vld [vmem:[%s143] sm:$0x1]
    %v145 = vadd.f32 %v142, %v144
    %v146 = vmul.f32 %v145, %v80
    %v148 = vperm.slane %v146, 0
    %v150 = vtanh.pop %v140
    %v151 = vmul.f32 %v150, 0.5
    %v152 = vadd.f32 %v151, 0.5
    %v153 = vsel %vm79, %v150, %v152
    %v154 = vmul.f32 %v153, 0.0
    %156 = vrot.lane.b32.xlu0 %v153, 64
    %v157 = vpop.permute.xlu0 %156
    %v159 = vmul.f32 %v153, %v157
    %161 = vrot.lane.b32.xlu0 %v159, 32
    %v162 = vpop.permute.xlu0 %161
    %v164 = vadd.f32 %v154, %v162
    %v165 = vtanh.pop %v164
    %167 = vrot.lane.b32.xlu0 %v165, 64
    %v168 = vpop.permute.xlu0 %167
    %v170 = vmul.f32 %v153, %v168
    %172 = vrot.lane.b32.xlu0 %v170, 32
    %v173 = vpop.permute.xlu0 %172
    %v174 = vsel %vm113, %v173, 0
    %176 = vmatpush.msra.mxu0 0.0
    %177 = vmatpush.msra.mxu0 0.0
    %178 = vmatpush.msra.mxu0 0.0
    %179 = vmatpush.msra.mxu0 0.0
    %180 = vmatpush.msra.mxu0 0.0
    %181 = vmatpush.msra.mxu0 0.0
    %182 = vmatpush.msra.mxu0 0.0
    %183 = vmatpush.msra.mxu0 0.0
    %184 = vmatpush.msra.mxu0 0.0
    %185 = vmatpush.msra.mxu0 0.0
    %186 = vmatpush.msra.mxu0 0.0
    %187 = vmatpush.msra.mxu0 0.0
    %188 = vmatpush.msra.mxu0 %v88
    %189 = vmatpush.msra.mxu0 %v87
    %190 = vmatpush.msra.mxu0 %v86
    %191 = vmatpush.msra.mxu0 %v85
    %192 = vmatmul.f32.gmra.mxu0 %v174
    %v193 = vpop.f32.mrf.mxu0
    %v194 = vadd.f32 0.0, %v193
    %195 = vdwg.mxu0
    %196 = vmatpush.msra.mxu0 0.0
    %197 = vmatpush.msra.mxu0 0.0
    %198 = vmatpush.msra.mxu0 0.0
    %199 = vmatpush.msra.mxu0 0.0
    %200 = vmatpush.msra.mxu0 0.0
    %201 = vmatpush.msra.mxu0 0.0
    %202 = vmatpush.msra.mxu0 0.0
    %203 = vmatpush.msra.mxu0 0.0
    %204 = vmatpush.msra.mxu0 0.0
    %205 = vmatpush.msra.mxu0 0.0
    %206 = vmatpush.msra.mxu0 0.0
    %207 = vmatpush.msra.mxu0 0.0
    %208 = vmatpush.msra.mxu0 %v97
    %209 = vmatpush.msra.mxu0 %v96
    %210 = vmatpush.msra.mxu0 %v95
    %211 = vmatpush.msra.mxu0 %v94
    %212 = vmatmul.f32.gmra.mxu0 %v174
    %v213 = vpop.f32.mrf.mxu0
    %v214 = vadd.f32 0.0, %v213
    %215 = vdwg.mxu0
    %v216 = vadd.f32 %v194, %v140
    %v217 = vtanh.pop %v216
    %v218 = vmul.f32 %v217, 0.5
    %v219 = vadd.f32 %v218, 0.5
    %v220 = vsel %vm79, %v217, %v219
    %v221 = vmul.f32 %v220, %v164
    %223 = vrot.lane.b32.xlu0 %v220, 64
    %v224 = vpop.permute.xlu0 %223
    %v226 = vmul.f32 %v220, %v224
    %228 = vrot.lane.b32.xlu0 %v226, 32
    %v229 = vpop.permute.xlu0 %228
    %v231 = vadd.f32 %v221, %v229
    %v232 = vtanh.pop %v231
    %234 = vrot.lane.b32.xlu0 %v232, 64
    %v235 = vpop.permute.xlu0 %234
    %v237 = vmul.f32 %v220, %v235
    %v238 = vadd.f32 %v214, %v148
    %v240 = vsel %vm113, 0.0, 0
    %242 = vmatpush.msra.mxu0 0.0
    %243 = vmatpush.msra.mxu0 0.0
    %244 = vmatpush.msra.mxu0 0.0
    %245 = vmatpush.msra.mxu0 0.0
    %246 = vmatpush.msra.mxu0 0.0
    %247 = vmatpush.msra.mxu0 0.0
    %248 = vmatpush.msra.mxu0 0.0
    %249 = vmatpush.msra.mxu0 0.0
    %250 = vmatpush.msra.mxu0 0.0
    %251 = vmatpush.msra.mxu0 0.0
    %252 = vmatpush.msra.mxu0 0.0
    %253 = vmatpush.msra.mxu0 0.0
    %254 = vmatpush.msra.mxu0 %v106
    %255 = vmatpush.msra.mxu0 %v105
    %256 = vmatpush.msra.mxu0 %v104
    %257 = vmatpush.msra.mxu0 %v103
    %258 = vmatmul.f32.gmra.mxu0 %v240
    %v259 = vpop.f32.mrf.mxu0
    %v260 = vadd.f32 0.0, %v259
    %261 = vdwg.mxu0
    %v262 = vadd.f32 %v238, %v260
    %v263 = vtanh.pop %v262
    %v264 = vmul.f32 %v263, 0.5
    %v265 = vadd.f32 %v264, 0.5
    %v266 = vsel %vm79, %v263, %v265
    %v267 = vmul.f32 %v266, 0.0
    %269 = vrot.lane.b32.xlu0 %v266, 64
    %v270 = vpop.permute.xlu0 %269
    %v272 = vmul.f32 %v266, %v270
    %274 = vrot.lane.b32.xlu0 %v272, 32
    %v275 = vpop.permute.xlu0 %274
    %v277 = vadd.f32 %v267, %v275
    %v278 = vtanh.pop %v277
    %280 = vrot.lane.b32.xlu0 %v278, 64
    %v281 = vpop.permute.xlu0 %280
    %v283 = vmul.f32 %v266, %v281
    %285 = vrot.lane.b32.xlu0 %v283, 32
    %v286 = vpop.permute.xlu0 %285
    %vm288 = vcmask 254976
    %289 = vst.msk [vmem:[#allocation2] sm:$0x3] %vm288, %v286
    %291 = vrot.lane.b32.xlu0 %v237, 32
    %v292 = vpop.permute.xlu0 %291
    %v293 = vsel %vm113, %v292, 0
    %295 = vmatpush.msra.mxu0 0.0
    %296 = vmatpush.msra.mxu0 0.0
    %297 = vmatpush.msra.mxu0 0.0
    %298 = vmatpush.msra.mxu0 0.0
    %299 = vmatpush.msra.mxu0 0.0
    %300 = vmatpush.msra.mxu0 0.0
    %301 = vmatpush.msra.mxu0 0.0
    %302 = vmatpush.msra.mxu0 0.0
    %303 = vmatpush.msra.mxu0 0.0
    %304 = vmatpush.msra.mxu0 0.0
    %305 = vmatpush.msra.mxu0 0.0
    %306 = vmatpush.msra.mxu0 0.0
    %307 = vmatpush.msra.mxu0 %v88
    %308 = vmatpush.msra.mxu0 %v87
    %309 = vmatpush.msra.mxu0 %v86
    %310 = vmatpush.msra.mxu0 %v85
    %311 = vmatmul.f32.gmra.mxu0 %v293
    %v312 = vpop.f32.mrf.mxu0
    %v313 = vadd.f32 0.0, %v312
    %314 = vdwg.mxu0
    %315 = vmatpush.msra.mxu0 0.0
    %316 = vmatpush.msra.mxu0 0.0
    %317 = vmatpush.msra.mxu0 0.0
    %318 = vmatpush.msra.mxu0 0.0
    %319 = vmatpush.msra.mxu0 0.0
    %320 = vmatpush.msra.mxu0 0.0
    %321 = vmatpush.msra.mxu0 0.0
    %322 = vmatpush.msra.mxu0 0.0
    %323 = vmatpush.msra.mxu0 0.0
    %324 = vmatpush.msra.mxu0 0.0
    %325 = vmatpush.msra.mxu0 0.0
    %326 = vmatpush.msra.mxu0 0.0
    %327 = vmatpush.msra.mxu0 %v97
    %328 = vmatpush.msra.mxu0 %v96
    %329 = vmatpush.msra.mxu0 %v95
    %330 = vmatpush.msra.mxu0 %v94
    %331 = vmatmul.f32.gmra.mxu0 %v293
    %v332 = vpop.f32.mrf.mxu0
    %v333 = vadd.f32 0.0, %v332
    %334 = vdwg.mxu0
    %v335 = vadd.f32 %v313, %v140
    %v336 = vtanh.pop %v335
    %v337 = vmul.f32 %v336, 0.5
    %v338 = vadd.f32 %v337, 0.5
    %v339 = vsel %vm79, %v336, %v338
    %v340 = vmul.f32 %v339, %v231
    %342 = vrot.lane.b32.xlu0 %v339, 64
    %v343 = vpop.permute.xlu0 %342
    %v345 = vmul.f32 %v339, %v343
    %347 = vrot.lane.b32.xlu0 %v345, 32
    %v348 = vpop.permute.xlu0 %347
    %v350 = vadd.f32 %v340, %v348
    %v351 = vtanh.pop %v350
    %353 = vrot.lane.b32.xlu0 %v351, 64
    %v354 = vpop.permute.xlu0 %353
    %v356 = vmul.f32 %v339, %v354
    %v357 = vadd.f32 %v333, %v148
    %v358 = vsel %vm113, %v286, 0
    %360 = vmatpush.msra.mxu0 0.0
    %361 = vmatpush.msra.mxu0 0.0
    %362 = vmatpush.msra.mxu0 0.0
    %363 = vmatpush.msra.mxu0 0.0
    %364 = vmatpush.msra.mxu0 0.0
    %365 = vmatpush.msra.mxu0 0.0
    %366 = vmatpush.msra.mxu0 0.0
    %367 = vmatpush.msra.mxu0 0.0
    %368 = vmatpush.msra.mxu0 0.0
    %369 = vmatpush.msra.mxu0 0.0
    %370 = vmatpush.msra.mxu0 0.0
    %371 = vmatpush.msra.mxu0 0.0
    %372 = vmatpush.msra.mxu0 %v106
    %373 = vmatpush.msra.mxu0 %v105
    %374 = vmatpush.msra.mxu0 %v104
    %375 = vmatpush.msra.mxu0 %v103
    %376 = vmatmul.f32.gmra.mxu0 %v358
    %v377 = vpop.f32.mrf.mxu0
    %v378 = vadd.f32 0.0, %v377
    %379 = vdwg.mxu0
    %v380 = vadd.f32 %v357, %v378
    %v381 = vtanh.pop %v380
    %v382 = vmul.f32 %v381, 0.5
    %v383 = vadd.f32 %v382, 0.5
    %v384 = vsel %vm79, %v381, %v383
    %v385 = vmul.f32 %v384, %v277
    %387 = vrot.lane.b32.xlu0 %v384, 64
    %v388 = vpop.permute.xlu0 %387
    %v390 = vmul.f32 %v384, %v388
    %392 = vrot.lane.b32.xlu0 %v390, 32
    %v393 = vpop.permute.xlu0 %392
    %v395 = vadd.f32 %v385, %v393
    %v396 = vtanh.pop %v395
    %398 = vrot.lane.b32.xlu0 %v396, 64
    %v399 = vpop.permute.xlu0 %398
    %v401 = vmul.f32 %v384, %v399
    %403 = vrot.lane.b32.xlu0 %v401, 32
    %v404 = vpop.permute.xlu0 %403
    %s406 = scalar_lea.vmem [#allocation2], 2
    %407 = vst.msk [vmem:[%s406] sm:$0x3] %vm288, %v404
    %409 = vrot.lane.b32.xlu0 %v356, 32
    %v410 = vpop.permute.xlu0 %409
    %v411 = vsel %vm113, %v410, 0
    %413 = vmatpush.msra.mxu0 0.0
    %414 = vmatpush.msra.mxu0 0.0
    %415 = vmatpush.msra.mxu0 0.0
    %416 = vmatpush.msra.mxu0 0.0
    %417 = vmatpush.msra.mxu0 0.0
    %418 = vmatpush.msra.mxu0 0.0
    %419 = vmatpush.msra.mxu0 0.0
    %420 = vmatpush.msra.mxu0 0.0
    %421 = vmatpush.msra.mxu0 0.0
    %422 = vmatpush.msra.mxu0 0.0
    %423 = vmatpush.msra.mxu0 0.0
    %424 = vmatpush.msra.mxu0 0.0
    %425 = vmatpush.msra.mxu0 %v88
    %426 = vmatpush.msra.mxu0 %v87
    %427 = vmatpush.msra.mxu0 %v86
    %428 = vmatpush.msra.mxu0 %v85
    %429 = vmatmul.f32.gmra.mxu0 %v411
    %v430 = vpop.f32.mrf.mxu0
    %v431 = vadd.f32 0.0, %v430
    %432 = vdwg.mxu0
    %433 = vmatpush.msra.mxu0 0.0
    %434 = vmatpush.msra.mxu0 0.0
    %435 = vmatpush.msra.mxu0 0.0
    %436 = vmatpush.msra.mxu0 0.0
    %437 = vmatpush.msra.mxu0 0.0
    %438 = vmatpush.msra.mxu0 0.0
    %439 = vmatpush.msra.mxu0 0.0
    %440 = vmatpush.msra.mxu0 0.0
    %441 = vmatpush.msra.mxu0 0.0
    %442 = vmatpush.msra.mxu0 0.0
    %443 = vmatpush.msra.mxu0 0.0
    %444 = vmatpush.msra.mxu0 0.0
    %445 = vmatpush.msra.mxu0 %v97
    %446 = vmatpush.msra.mxu0 %v96
    %447 = vmatpush.msra.mxu0 %v95
    %448 = vmatpush.msra.mxu0 %v94
    %449 = vmatmul.f32.gmra.mxu0 %v411
    %v450 = vpop.f32.mrf.mxu0
    %v451 = vadd.f32 0.0, %v450
    %452 = vdwg.mxu0
    %v453 = vadd.f32 %v431, %v140
    %v454 = vtanh.pop %v453
    %v455 = vmul.f32 %v454, 0.5
    %v456 = vadd.f32 %v455, 0.5
    %v457 = vsel %vm79, %v454, %v456
    %v458 = vmul.f32 %v457, %v350
    %460 = vrot.lane.b32.xlu0 %v457, 64
    %v461 = vpop.permute.xlu0 %460
    %v463 = vmul.f32 %v457, %v461
    %465 = vrot.lane.b32.xlu0 %v463, 32
    %v466 = vpop.permute.xlu0 %465
    %v468 = vadd.f32 %v458, %v466
    %v469 = vtanh.pop %v468
    %471 = vrot.lane.b32.xlu0 %v469, 64
    %v472 = vpop.permute.xlu0 %471
    %v474 = vmul.f32 %v457, %v472
    %v475 = vadd.f32 %v451, %v148
    %v476 = vsel %vm113, %v404, 0
    %478 = vmatpush.msra.mxu0 0.0
    %479 = vmatpush.msra.mxu0 0.0
    %480 = vmatpush.msra.mxu0 0.0
    %481 = vmatpush.msra.mxu0 0.0
    %482 = vmatpush.msra.mxu0 0.0
    %483 = vmatpush.msra.mxu0 0.0
    %484 = vmatpush.msra.mxu0 0.0
    %485 = vmatpush.msra.mxu0 0.0
    %486 = vmatpush.msra.mxu0 0.0
    %487 = vmatpush.msra.mxu0 0.0
    %488 = vmatpush.msra.mxu0 0.0
    %489 = vmatpush.msra.mxu0 0.0
    %490 = vmatpush.msra.mxu0 %v106
    %491 = vmatpush.msra.mxu0 %v105
    %492 = vmatpush.msra.mxu0 %v104
    %493 = vmatpush.msra.mxu0 %v103
    %494 = vmatmul.f32.gmra.mxu0 %v476
    %v495 = vpop.f32.mrf.mxu0
    %v496 = vadd.f32 0.0, %v495
    %497 = vdwg.mxu0
    %v498 = vadd.f32 %v475, %v496
    %v499 = vtanh.pop %v498
    %v500 = vmul.f32 %v499, 0.5
    %v501 = vadd.f32 %v500, 0.5
    %v502 = vsel %vm79, %v499, %v501
    %v503 = vmul.f32 %v502, %v395
    %505 = vrot.lane.b32.xlu0 %v502, 64
    %v506 = vpop.permute.xlu0 %505
    %v508 = vmul.f32 %v502, %v506
    %510 = vrot.lane.b32.xlu0 %v508, 32
    %v511 = vpop.permute.xlu0 %510
    %v513 = vadd.f32 %v503, %v511
    %v514 = vtanh.pop %v513
    %516 = vrot.lane.b32.xlu0 %v514, 64
    %v517 = vpop.permute.xlu0 %516
    %v519 = vmul.f32 %v502, %v517
    %521 = vrot.lane.b32.xlu0 %v519, 32
    %v522 = vpop.permute.xlu0 %521
    %s524 = scalar_lea.vmem [#allocation2], 4
    %525 = vst.msk [vmem:[%s524] sm:$0x3] %vm288, %v522
    %527 = vrot.lane.b32.xlu0 %v474, 32
    %v528 = vpop.permute.xlu0 %527
    %v529 = vsel %vm113, %v528, 0
    %531 = vmatpush.msra.mxu0 0.0
    %532 = vmatpush.msra.mxu0 0.0
    %533 = vmatpush.msra.mxu0 0.0
    %534 = vmatpush.msra.mxu0 0.0
    %535 = vmatpush.msra.mxu0 0.0
    %536 = vmatpush.msra.mxu0 0.0
    %537 = vmatpush.msra.mxu0 0.0
    %538 = vmatpush.msra.mxu0 0.0
    %539 = vmatpush.msra.mxu0 0.0
    %540 = vmatpush.msra.mxu0 0.0
    %541 = vmatpush.msra.mxu0 0.0
    %542 = vmatpush.msra.mxu0 0.0
    %543 = vmatpush.msra.mxu0 %v88
    %544 = vmatpush.msra.mxu0 %v87
    %545 = vmatpush.msra.mxu0 %v86
    %546 = vmatpush.msra.mxu0 %v85
    %547 = vmatmul.f32.gmra.mxu0 %v529
    %v548 = vpop.f32.mrf.mxu0
    %v549 = vadd.f32 0.0, %v548
    %550 = vdwg.mxu0
    %551 = vmatpush.msra.mxu0 0.0
    %552 = vmatpush.msra.mxu0 0.0
    %553 = vmatpush.msra.mxu0 0.0
    %554 = vmatpush.msra.mxu0 0.0
    %555 = vmatpush.msra.mxu0 0.0
    %556 = vmatpush.msra.mxu0 0.0
    %557 = vmatpush.msra.mxu0 0.0
    %558 = vmatpush.msra.mxu0 0.0
    %559 = vmatpush.msra.mxu0 0.0
    %560 = vmatpush.msra.mxu0 0.0
    %561 = vmatpush.msra.mxu0 0.0
    %562 = vmatpush.msra.mxu0 0.0
    %563 = vmatpush.msra.mxu0 %v97
    %564 = vmatpush.msra.mxu0 %v96
    %565 = vmatpush.msra.mxu0 %v95
    %566 = vmatpush.msra.mxu0 %v94
    %567 = vmatmul.f32.gmra.mxu0 %v529
    %v568 = vpop.f32.mrf.mxu0
    %v569 = vadd.f32 0.0, %v568
    %570 = vdwg.mxu0
    %v571 = vadd.f32 %v549, %v140
    %v572 = vtanh.pop %v571
    %v573 = vmul.f32 %v572, 0.5
    %v574 = vadd.f32 %v573, 0.5
    %v575 = vsel %vm79, %v572, %v574
    %v576 = vmul.f32 %v575, %v468
    %578 = vrot.lane.b32.xlu0 %v575, 64
    %v579 = vpop.permute.xlu0 %578
    %v581 = vmul.f32 %v575, %v579
    %583 = vrot.lane.b32.xlu0 %v581, 32
    %v584 = vpop.permute.xlu0 %583
    %v586 = vadd.f32 %v576, %v584
    %v587 = vtanh.pop %v586
    %589 = vrot.lane.b32.xlu0 %v587, 64
    %v590 = vpop.permute.xlu0 %589
    %v592 = vmul.f32 %v575, %v590
    %v593 = vadd.f32 %v569, %v148
    %v594 = vsel %vm113, %v522, 0
    %596 = vmatpush.msra.mxu0 0.0
    %597 = vmatpush.msra.mxu0 0.0
    %598 = vmatpush.msra.mxu0 0.0
    %599 = vmatpush.msra.mxu0 0.0
    %600 = vmatpush.msra.mxu0 0.0
    %601 = vmatpush.msra.mxu0 0.0
    %602 = vmatpush.msra.mxu0 0.0
    %603 = vmatpush.msra.mxu0 0.0
    %604 = vmatpush.msra.mxu0 0.0
    %605 = vmatpush.msra.mxu0 0.0
    %606 = vmatpush.msra.mxu0 0.0
    %607 = vmatpush.msra.mxu0 0.0
    %608 = vmatpush.msra.mxu0 %v106
    %609 = vmatpush.msra.mxu0 %v105
    %610 = vmatpush.msra.mxu0 %v104
    %611 = vmatpush.msra.mxu0 %v103
    %612 = vmatmul.f32.gmra.mxu0 %v594
    %v613 = vpop.f32.mrf.mxu0
    %v614 = vadd.f32 0.0, %v613
    %615 = vdwg.mxu0
    %v616 = vadd.f32 %v593, %v614
    %v617 = vtanh.pop %v616
    %v618 = vmul.f32 %v617, 0.5
    %v619 = vadd.f32 %v618, 0.5
    %v620 = vsel %vm79, %v617, %v619
    %v621 = vmul.f32 %v620, %v513
    %623 = vrot.lane.b32.xlu0 %v620, 64
    %v624 = vpop.permute.xlu0 %623
    %v626 = vmul.f32 %v620, %v624
    %628 = vrot.lane.b32.xlu0 %v626, 32
    %v629 = vpop.permute.xlu0 %628
    %v631 = vadd.f32 %v621, %v629
    %v632 = vtanh.pop %v631
    %634 = vrot.lane.b32.xlu0 %v632, 64
    %v635 = vpop.permute.xlu0 %634
    %v637 = vmul.f32 %v620, %v635
    %639 = vrot.lane.b32.xlu0 %v637, 32
    %v640 = vpop.permute.xlu0 %639
    %s642 = scalar_lea.vmem [#allocation2], 6
    %643 = vst.msk [vmem:[%s642] sm:$0x3] %vm288, %v640
    %645 = vrot.lane.b32.xlu0 %v592, 32
    %v646 = vpop.permute.xlu0 %645
    %v647 = vsel %vm113, %v646, 0
    %649 = vmatpush.msra.mxu0 0.0
    %650 = vmatpush.msra.mxu0 0.0
    %651 = vmatpush.msra.mxu0 0.0
    %652 = vmatpush.msra.mxu0 0.0
    %653 = vmatpush.msra.mxu0 0.0
    %654 = vmatpush.msra.mxu0 0.0
    %655 = vmatpush.msra.mxu0 0.0
    %656 = vmatpush.msra.mxu0 0.0
    %657 = vmatpush.msra.mxu0 0.0
    %658 = vmatpush.msra.mxu0 0.0
    %659 = vmatpush.msra.mxu0 0.0
    %660 = vmatpush.msra.mxu0 0.0
    %661 = vmatpush.msra.mxu0 %v88
    %662 = vmatpush.msra.mxu0 %v87
    %663 = vmatpush.msra.mxu0 %v86
    %664 = vmatpush.msra.mxu0 %v85
    %665 = vmatmul.f32.gmra.mxu0 %v647
    %v666 = vpop.f32.mrf.mxu0
    %v667 = vadd.f32 0.0, %v666
    %668 = vdwg.mxu0
    %669 = vmatpush.msra.mxu0 0.0
    %670 = vmatpush.msra.mxu0 0.0
    %671 = vmatpush.msra.mxu0 0.0
    %672 = vmatpush.msra.mxu0 0.0
    %673 = vmatpush.msra.mxu0 0.0
    %674 = vmatpush.msra.mxu0 0.0
    %675 = vmatpush.msra.mxu0 0.0
    %676 = vmatpush.msra.mxu0 0.0
    %677 = vmatpush.msra.mxu0 0.0
    %678 = vmatpush.msra.mxu0 0.0
    %679 = vmatpush.msra.mxu0 0.0
    %680 = vmatpush.msra.mxu0 0.0
    %681 = vmatpush.msra.mxu0 %v97
    %682 = vmatpush.msra.mxu0 %v96
    %683 = vmatpush.msra.mxu0 %v95
    %684 = vmatpush.msra.mxu0 %v94
    %685 = vmatmul.f32.gmra.mxu0 %v647
    %v686 = vpop.f32.mrf.mxu0
    %v687 = vadd.f32 0.0, %v686
    %688 = vdwg.mxu0
    %v689 = vadd.f32 %v667, %v140
    %v690 = vtanh.pop %v689
    %v691 = vmul.f32 %v690, 0.5
    %v692 = vadd.f32 %v691, 0.5
    %v693 = vsel %vm79, %v690, %v692
    %v694 = vmul.f32 %v693, %v586
    %696 = vrot.lane.b32.xlu0 %v693, 64
    %v697 = vpop.permute.xlu0 %696
    %v699 = vmul.f32 %v693, %v697
    %701 = vrot.lane.b32.xlu0 %v699, 32
    %v702 = vpop.permute.xlu0 %701
    %v704 = vadd.f32 %v694, %v702
    %v705 = vtanh.pop %v704
    %707 = vrot.lane.b32.xlu0 %v705, 64
    %v708 = vpop.permute.xlu0 %707
    %v710 = vmul.f32 %v693, %v708
    %v711 = vadd.f32 %v687, %v148
    %v712 = vsel %vm113, %v640, 0
    %714 = vmatpush.msra.mxu0 0.0
    %715 = vmatpush.msra.mxu0 0.0
    %716 = vmatpush.msra.mxu0 0.0
    %717 = vmatpush.msra.mxu0 0.0
    %718 = vmatpush.msra.mxu0 0.0
    %719 = vmatpush.msra.mxu0 0.0
    %720 = vmatpush.msra.mxu0 0.0
    %721 = vmatpush.msra.mxu0 0.0
    %722 = vmatpush.msra.mxu0 0.0
    %723 = vmatpush.msra.mxu0 0.0
    %724 = vmatpush.msra.mxu0 0.0
    %725 = vmatpush.msra.mxu0 0.0
    %726 = vmatpush.msra.mxu0 %v106
    %727 = vmatpush.msra.mxu0 %v105
    %728 = vmatpush.msra.mxu0 %v104
    %729 = vmatpush.msra.mxu0 %v103
    %730 = vmatmul.f32.gmra.mxu0 %v712
    %v731 = vpop.f32.mrf.mxu0
    %v732 = vadd.f32 0.0, %v731
    %733 = vdwg.mxu0
    %v734 = vadd.f32 %v711, %v732
    %v735 = vtanh.pop %v734
    %v736 = vmul.f32 %v735, 0.5
    %v737 = vadd.f32 %v736, 0.5
    %v738 = vsel %vm79, %v735, %v737
    %v739 = vmul.f32 %v738, %v631
    %741 = vrot.lane.b32.xlu0 %v738, 64
    %v742 = vpop.permute.xlu0 %741
    %v744 = vmul.f32 %v738, %v742
    %746 = vrot.lane.b32.xlu0 %v744, 32
    %v747 = vpop.permute.xlu0 %746
    %v749 = vadd.f32 %v739, %v747
    %v750 = vtanh.pop %v749
    %752 = vrot.lane.b32.xlu0 %v750, 64
    %v753 = vpop.permute.xlu0 %752
    %v755 = vmul.f32 %v738, %v753
    %757 = vrot.lane.b32.xlu0 %v755, 32
    %v758 = vpop.permute.xlu0 %757
    %s760 = scalar_lea.vmem [#allocation2], 8
    %761 = vst.msk [vmem:[%s760] sm:$0x3] %vm288, %v758
    %763 = vrot.lane.b32.xlu0 %v710, 32
    %v764 = vpop.permute.xlu0 %763
    %v765 = vsel %vm113, %v764, 0
    %767 = vmatpush.msra.mxu0 0.0
    %768 = vmatpush.msra.mxu0 0.0
    %769 = vmatpush.msra.mxu0 0.0
    %770 = vmatpush.msra.mxu0 0.0
    %771 = vmatpush.msra.mxu0 0.0
    %772 = vmatpush.msra.mxu0 0.0
    %773 = vmatpush.msra.mxu0 0.0
    %774 = vmatpush.msra.mxu0 0.0
    %775 = vmatpush.msra.mxu0 0.0
    %776 = vmatpush.msra.mxu0 0.0
    %777 = vmatpush.msra.mxu0 0.0
    %778 = vmatpush.msra.mxu0 0.0
    %779 = vmatpush.msra.mxu0 %v88
    %780 = vmatpush.msra.mxu0 %v87
    %781 = vmatpush.msra.mxu0 %v86
    %782 = vmatpush.msra.mxu0 %v85
    %783 = vmatmul.f32.gmra.mxu0 %v765
    %v784 = vpop.f32.mrf.mxu0
    %v785 = vadd.f32 0.0, %v784
    %786 = vdwg.mxu0
    %787 = vmatpush.msra.mxu0 0.0
    %788 = vmatpush.msra.mxu0 0.0
    %789 = vmatpush.msra.mxu0 0.0
    %790 = vmatpush.msra.mxu0 0.0
    %791 = vmatpush.msra.mxu0 0.0
    %792 = vmatpush.msra.mxu0 0.0
    %793 = vmatpush.msra.mxu0 0.0
    %794 = vmatpush.msra.mxu0 0.0
    %795 = vmatpush.msra.mxu0 0.0
    %796 = vmatpush.msra.mxu0 0.0
    %797 = vmatpush.msra.mxu0 0.0
    %798 = vmatpush.msra.mxu0 0.0
    %799 = vmatpush.msra.mxu0 %v97
    %800 = vmatpush.msra.mxu0 %v96
    %801 = vmatpush.msra.mxu0 %v95
    %802 = vmatpush.msra.mxu0 %v94
    %803 = vmatmul.f32.gmra.mxu0 %v765
    %v804 = vpop.f32.mrf.mxu0
    %v805 = vadd.f32 0.0, %v804
    %806 = vdwg.mxu0
    %v807 = vadd.f32 %v785, %v140
    %v808 = vtanh.pop %v807
    %v809 = vmul.f32 %v808, 0.5
    %v810 = vadd.f32 %v809, 0.5
    %v811 = vsel %vm79, %v808, %v810
    %v812 = vmul.f32 %v811, %v704
    %814 = vrot.lane.b32.xlu0 %v811, 64
    %v815 = vpop.permute.xlu0 %814
    %v817 = vmul.f32 %v811, %v815
    %819 = vrot.lane.b32.xlu0 %v817, 32
    %v820 = vpop.permute.xlu0 %819
    %v822 = vadd.f32 %v812, %v820
    %v823 = vtanh.pop %v822
    %825 = vrot.lane.b32.xlu0 %v823, 64
    %v826 = vpop.permute.xlu0 %825
    %v828 = vmul.f32 %v811, %v826
    %v829 = vadd.f32 %v805, %v148
    %v830 = vsel %vm113, %v758, 0
    %832 = vmatpush.msra.mxu0 0.0
    %833 = vmatpush.msra.mxu0 0.0
    %834 = vmatpush.msra.mxu0 0.0
    %835 = vmatpush.msra.mxu0 0.0
    %836 = vmatpush.msra.mxu0 0.0
    %837 = vmatpush.msra.mxu0 0.0
    %838 = vmatpush.msra.mxu0 0.0
    %839 = vmatpush.msra.mxu0 0.0
    %840 = vmatpush.msra.mxu0 0.0
    %841 = vmatpush.msra.mxu0 0.0
    %842 = vmatpush.msra.mxu0 0.0
    %843 = vmatpush.msra.mxu0 0.0
    %844 = vmatpush.msra.mxu0 %v106
    %845 = vmatpush.msra.mxu0 %v105
    %846 = vmatpush.msra.mxu0 %v104
    %847 = vmatpush.msra.mxu0 %v103
    %848 = vmatmul.f32.gmra.mxu0 %v830
    %v849 = vpop.f32.mrf.mxu0
    %v850 = vadd.f32 0.0, %v849
    %851 = vdwg.mxu0
    %v852 = vadd.f32 %v829, %v850
    %v853 = vtanh.pop %v852
    %v854 = vmul.f32 %v853, 0.5
    %v855 = vadd.f32 %v854, 0.5
    %v856 = vsel %vm79, %v853, %v855
    %v857 = vmul.f32 %v856, %v749
    %859 = vrot.lane.b32.xlu0 %v856, 64
    %v860 = vpop.permute.xlu0 %859
    %v862 = vmul.f32 %v856, %v860
    %864 = vrot.lane.b32.xlu0 %v862, 32
    %v865 = vpop.permute.xlu0 %864
    %v867 = vadd.f32 %v857, %v865
    %v868 = vtanh.pop %v867
    %870 = vrot.lane.b32.xlu0 %v868, 64
    %v871 = vpop.permute.xlu0 %870
    %v873 = vmul.f32 %v856, %v871
    %875 = vrot.lane.b32.xlu0 %v873, 32
    %v876 = vpop.permute.xlu0 %875
    %s878 = scalar_lea.vmem [#allocation2], 10
    %879 = vst.msk [vmem:[%s878] sm:$0x3] %vm288, %v876
    %881 = vrot.lane.b32.xlu0 %v828, 32
    %v882 = vpop.permute.xlu0 %881
    %v883 = vsel %vm113, %v882, 0
    %885 = vmatpush.msra.mxu0 0.0
    %886 = vmatpush.msra.mxu0 0.0
    %887 = vmatpush.msra.mxu0 0.0
    %888 = vmatpush.msra.mxu0 0.0
    %889 = vmatpush.msra.mxu0 0.0
    %890 = vmatpush.msra.mxu0 0.0
    %891 = vmatpush.msra.mxu0 0.0
    %892 = vmatpush.msra.mxu0 0.0
    %893 = vmatpush.msra.mxu0 0.0
    %894 = vmatpush.msra.mxu0 0.0
    %895 = vmatpush.msra.mxu0 0.0
    %896 = vmatpush.msra.mxu0 0.0
    %897 = vmatpush.msra.mxu0 %v88
    %898 = vmatpush.msra.mxu0 %v87
    %899 = vmatpush.msra.mxu0 %v86
    %900 = vmatpush.msra.mxu0 %v85
    %901 = vmatmul.f32.gmra.mxu0 %v883
    %v902 = vpop.f32.mrf.mxu0
    %v903 = vadd.f32 0.0, %v902
    %904 = vdwg.mxu0
    %905 = vmatpush.msra.mxu0 0.0
    %906 = vmatpush.msra.mxu0 0.0
    %907 = vmatpush.msra.mxu0 0.0
    %908 = vmatpush.msra.mxu0 0.0
    %909 = vmatpush.msra.mxu0 0.0
    %910 = vmatpush.msra.mxu0 0.0
    %911 = vmatpush.msra.mxu0 0.0
    %912 = vmatpush.msra.mxu0 0.0
    %913 = vmatpush.msra.mxu0 0.0
    %914 = vmatpush.msra.mxu0 0.0
    %915 = vmatpush.msra.mxu0 0.0
    %916 = vmatpush.msra.mxu0 0.0
    %917 = vmatpush.msra.mxu0 %v97
    %918 = vmatpush.msra.mxu0 %v96
    %919 = vmatpush.msra.mxu0 %v95
    %920 = vmatpush.msra.mxu0 %v94
    %921 = vmatmul.f32.gmra.mxu0 %v883
    %v922 = vpop.f32.mrf.mxu0
    %v923 = vadd.f32 0.0, %v922
    %924 = vdwg.mxu0
    %v925 = vadd.f32 %v903, %v140
    %v926 = vtanh.pop %v925
    %v927 = vmul.f32 %v926, 0.5
    %v928 = vadd.f32 %v927, 0.5
    %v929 = vsel %vm79, %v926, %v928
    %v930 = vmul.f32 %v929, %v822
    %932 = vrot.lane.b32.xlu0 %v929, 64
    %v933 = vpop.permute.xlu0 %932
    %v935 = vmul.f32 %v929, %v933
    %937 = vrot.lane.b32.xlu0 %v935, 32
    %v938 = vpop.permute.xlu0 %937
    %v940 = vadd.f32 %v930, %v938
    %v941 = vtanh.pop %v940
    %943 = vrot.lane.b32.xlu0 %v941, 64
    %v944 = vpop.permute.xlu0 %943
    %v946 = vmul.f32 %v929, %v944
    %v947 = vadd.f32 %v923, %v148
    %v948 = vsel %vm113, %v876, 0
    %950 = vmatpush.msra.mxu0 0.0
    %951 = vmatpush.msra.mxu0 0.0
    %952 = vmatpush.msra.mxu0 0.0
    %953 = vmatpush.msra.mxu0 0.0
    %954 = vmatpush.msra.mxu0 0.0
    %955 = vmatpush.msra.mxu0 0.0
    %956 = vmatpush.msra.mxu0 0.0
    %957 = vmatpush.msra.mxu0 0.0
    %958 = vmatpush.msra.mxu0 0.0
    %959 = vmatpush.msra.mxu0 0.0
    %960 = vmatpush.msra.mxu0 0.0
    %961 = vmatpush.msra.mxu0 0.0
    %962 = vmatpush.msra.mxu0 %v106
    %963 = vmatpush.msra.mxu0 %v105
    %964 = vmatpush.msra.mxu0 %v104
    %965 = vmatpush.msra.mxu0 %v103
    %966 = vmatmul.f32.gmra.mxu0 %v948
    %v967 = vpop.f32.mrf.mxu0
    %v968 = vadd.f32 0.0, %v967
    %969 = vdwg.mxu0
    %v970 = vadd.f32 %v947, %v968
    %v971 = vtanh.pop %v970
    %v972 = vmul.f32 %v971, 0.5
    %v973 = vadd.f32 %v972, 0.5
    %v974 = vsel %vm79, %v971, %v973
    %v975 = vmul.f32 %v974, %v867
    %977 = vrot.lane.b32.xlu0 %v974, 64
    %v978 = vpop.permute.xlu0 %977
    %v980 = vmul.f32 %v974, %v978
    %982 = vrot.lane.b32.xlu0 %v980, 32
    %v983 = vpop.permute.xlu0 %982
    %v985 = vadd.f32 %v975, %v983
    %v986 = vtanh.pop %v985
    %988 = vrot.lane.b32.xlu0 %v986, 64
    %v989 = vpop.permute.xlu0 %988
    %v991 = vmul.f32 %v974, %v989
    %993 = vrot.lane.b32.xlu0 %v991, 32
    %v994 = vpop.permute.xlu0 %993
    %s996 = scalar_lea.vmem [#allocation2], 12
    %997 = vst.msk [vmem:[%s996] sm:$0x3] %vm288, %v994
    %999 = vrot.lane.b32.xlu0 %v946, 32
    %v1000 = vpop.permute.xlu0 %999
    %v1001 = vsel %vm113, %v1000, 0
    %1003 = vmatpush.msra.mxu0 0.0
    %1004 = vmatpush.msra.mxu0 0.0
    %1005 = vmatpush.msra.mxu0 0.0
    %1006 = vmatpush.msra.mxu0 0.0
    %1007 = vmatpush.msra.mxu0 0.0
    %1008 = vmatpush.msra.mxu0 0.0
    %1009 = vmatpush.msra.mxu0 0.0
    %1010 = vmatpush.msra.mxu0 0.0
    %1011 = vmatpush.msra.mxu0 0.0
    %1012 = vmatpush.msra.mxu0 0.0
    %1013 = vmatpush.msra.mxu0 0.0
    %1014 = vmatpush.msra.mxu0 0.0
    %1015 = vmatpush.msra.mxu0 %v97
    %1016 = vmatpush.msra.mxu0 %v96
    %1017 = vmatpush.msra.mxu0 %v95
    %1018 = vmatpush.msra.mxu0 %v94
    %1019 = vmatmul.f32.gmra.mxu0 %v1001
    %v1020 = vpop.f32.mrf.mxu0
    %v1021 = vadd.f32 0.0, %v1020
    %1022 = vdwg.mxu0
    %v1023 = vadd.f32 %v1021, %v148
    %v1024 = vsel %vm113, %v994, 0
    %1026 = vmatpush.msra.mxu0 0.0
    %1027 = vmatpush.msra.mxu0 0.0
    %1028 = vmatpush.msra.mxu0 0.0
    %1029 = vmatpush.msra.mxu0 0.0
    %1030 = vmatpush.msra.mxu0 0.0
    %1031 = vmatpush.msra.mxu0 0.0
    %1032 = vmatpush.msra.mxu0 0.0
    %1033 = vmatpush.msra.mxu0 0.0
    %1034 = vmatpush.msra.mxu0 0.0
    %1035 = vmatpush.msra.mxu0 0.0
    %1036 = vmatpush.msra.mxu0 0.0
    %1037 = vmatpush.msra.mxu0 0.0
    %1038 = vmatpush.msra.mxu0 %v106
    %1039 = vmatpush.msra.mxu0 %v105
    %1040 = vmatpush.msra.mxu0 %v104
    %1041 = vmatpush.msra.mxu0 %v103
    %1042 = vmatmul.f32.gmra.mxu0 %v1024
    %v1043 = vpop.f32.mrf.mxu0
    %v1044 = vadd.f32 0.0, %v1043
    %1045 = vdwg.mxu0
    %v1046 = vadd.f32 %v1023, %v1044
    %v1047 = vtanh.pop %v1046
    %v1048 = vmul.f32 %v1047, 0.5
    %v1049 = vadd.f32 %v1048, 0.5
    %v1050 = vsel %vm79, %v1047, %v1049
    %v1051 = vmul.f32 %v1050, %v985
    %1053 = vrot.lane.b32.xlu0 %v1050, 64
    %v1054 = vpop.permute.xlu0 %1053
    %v1056 = vmul.f32 %v1050, %v1054
    %1058 = vrot.lane.b32.xlu0 %v1056, 32
    %v1059 = vpop.permute.xlu0 %1058
    %v1061 = vadd.f32 %v1051, %v1059
    %v1062 = vtanh.pop %v1061
    %1064 = vrot.lane.b32.xlu0 %v1062, 64
    %v1065 = vpop.permute.xlu0 %1064
    %v1067 = vmul.f32 %v1050, %v1065
    %1069 = vrot.lane.b32.xlu0 %v1067, 32
    %v1070 = vpop.permute.xlu0 %1069
    %1072 = vst.msk [vmem:[#allocation2 + $0xe] sm:$0x3] %vm288, %v1070
    %v1073 = vld [vmem:[#allocation2] ss:$2 sm:$0xff]
    %v1074 = vld [vmem:[%s5] sm:$0xff]
    %v1075 = vld [vmem:[%s5 + $0x8] sm:$0xf]
    %v1076 = vld [vmem:[%s6] sm:$0xff]
    %v1077 = vld [vmem:[%s6 + $0x8] sm:$0xf]
    %1079 = vset.pattern.permute.xlu0 0
    %1080 = vperm.xlu0 %1079, %v1076
    %v1081 = vpop.permute.xlu0 %1080
    %1084 = vset.pattern.permute.xlu0 0
    %1085 = vperm.xlu0 %1084, %v1077
    %v1086 = vpop.permute.xlu0 %1085
    %v1089 = vsel %vm113, %v1074, 0
    %v1092 = vsel %vm113, %v1075, 0
    %v1095 = vsel %vm113, %v1073, 0
    %1097 = vmatpush.xpose.msra.mxu0 0.0
    %1098 = vmatpush.xpose.msra.mxu0 0.0
    %1099 = vmatpush.xpose.msra.mxu0 0.0
    %1100 = vmatpush.xpose.msra.mxu0 0.0
    %1101 = vmatpush.xpose.msra.mxu0 0.0
    %1102 = vmatpush.xpose.msra.mxu0 0.0
    %1103 = vmatpush.xpose.msra.mxu0 0.0
    %1104 = vmatpush.xpose.msra.mxu0 0.0
    %1105 = vmatpush.xpose.msra.mxu0 0.0
    %1106 = vmatpush.xpose.msra.mxu0 0.0
    %1107 = vmatpush.xpose.msra.mxu0 0.0
    %1108 = vmatpush.xpose.msra.mxu0 0.0
    %1109 = vmatpush.xpose.msra.mxu0 0.0
    %1110 = vmatpush.xpose.msra.mxu0 0.0
    %1111 = vmatpush.xpose.msra.mxu0 0.0
    %1112 = vmatpush.xpose.msra.mxu0 %v1095
    %1113 = vmatmul.f32.gmra.mxu0 %v1089
    %v1114 = vpop.f32.mrf.mxu0
    %v1115 = vadd.f32 %v1081, %v1114
    %1116 = vmatmul.f32.gmra.mxu0 %v1092
    %v1117 = vpop.f32.mrf.mxu0
    %v1118 = vadd.f32 %v1086, %v1117
    %1119 = vdwg.mxu0
    %vm1120 = vcmask 64512
    %1121 = vst.msk [vmem:[%s7] sm:$0xff] %vm1120, %v1115
    %vm1122 = vcmask 60416
    %1123 = vst.msk [vmem:[%s7 + $0x8] sm:$0xf] %vm1122, %v1118
    %s1124 = scalar_lea.vmem [#allocation2], 1
    %v1125 = vld [vmem:[%s1124] ss:$2 sm:$0xff]
    %v1126 = vld [vmem:[%s5] sm:$0xff]
    %v1127 = vld [vmem:[%s5 + $0x8] sm:$0xf]
    %v1128 = vld [vmem:[%s6] sm:$0xff]
    %v1129 = vld [vmem:[%s6 + $0x8] sm:$0xf]
    %1131 = vset.pattern.permute.xlu0 0
    %1132 = vperm.xlu0 %1131, %v1128
    %v1133 = vpop.permute.xlu0 %1132
    %1136 = vset.pattern.permute.xlu0 0
    %1137 = vperm.xlu0 %1136, %v1129
    %v1138 = vpop.permute.xlu0 %1137
    %v1141 = vsel %vm113, %v1126, 0
    %v1144 = vsel %vm113, %v1127, 0
    %v1147 = vsel %vm113, %v1125, 0
    %1149 = vmatpush.xpose.msra.mxu0 0.0
    %1150 = vmatpush.xpose.msra.mxu0 0.0
    %1151 = vmatpush.xpose.msra.mxu0 0.0
    %1152 = vmatpush.xpose.msra.mxu0 0.0
    %1153 = vmatpush.xpose.msra.mxu0 0.0
    %1154 = vmatpush.xpose.msra.mxu0 0.0
    %1155 = vmatpush.xpose.msra.mxu0 0.0
    %1156 = vmatpush.xpose.msra.mxu0 0.0
    %1157 = vmatpush.xpose.msra.mxu0 0.0
    %1158 = vmatpush.xpose.msra.mxu0 0.0
    %1159 = vmatpush.xpose.msra.mxu0 0.0
    %1160 = vmatpush.xpose.msra.mxu0 0.0
    %1161 = vmatpush.xpose.msra.mxu0 0.0
    %1162 = vmatpush.xpose.msra.mxu0 0.0
    %1163 = vmatpush.xpose.msra.mxu0 0.0
    %1164 = vmatpush.xpose.msra.mxu0 %v1147
    %1165 = vmatmul.f32.gmra.mxu0 %v1141
    %v1166 = vpop.f32.mrf.mxu0
    %v1167 = vadd.f32 %v1133, %v1166
    %1168 = vmatmul.f32.gmra.mxu0 %v1144
    %v1169 = vpop.f32.mrf.mxu0
    %v1170 = vadd.f32 %v1138, %v1169
    %1171 = vdwg.mxu0
    %s1172 = scalar_lea.vmem %s7, 16
    %1173 = vst.msk [vmem:[%s1172] sm:$0xff] %vm1120, %v1167
    %1174 = vst.msk [vmem:[%s1172 + $0x8] sm:$0xf] %vm1122, %v1170
    // Predicated region
    $region42: #{tpu_custom_call.1} parent=1 // pred_check
      _
    $region43: #{tpu_custom_call.1} parent=1 // pred_check_branch
      %1176 = sbr.rel (0) target = $region45
    $region44: #{tpu_custom_call.1} parent=1 // pred_region
      _
    $region45: #{tpu_custom_call.1} parent=1 // pred_fallthru
      _
    // Predicated region
    $region46: #{tpu_custom_call.1} parent=1 // pred_check
      _
    $region47: #{tpu_custom_call.1} parent=1 // pred_check_branch
      %1178 = sbr.rel (0) target = $region49
    $region48: #{tpu_custom_call.1} parent=1 // pred_region
      _
    $region49: #{tpu_custom_call.1} parent=1 // pred_fallthru
      _
    %1179 = vsyncpa [#allocation4], 1
    %1180 = vsyncpa [#allocation6], 1

</llo_original>
